<compile_context>
chip_gen: v7x
topology: tpu7x:2x2x1
jax: 0.10.0
libtpu: 0.0.40
codegen_flags: <defaults>
</compile_context>

<pallas_src>
import numpy as np
import jax
import jax.numpy as jnp
from jax.experimental import pallas as pl
from jax.experimental.pallas import tpu as pltpu

# ---- module hyper-parameters (from the PyTorch file) ----
D_MODEL = 32
NODES = 9
P = NODES * NODES          # n_ctx = 81 (sequence length produced by the model)

# VMEM budgeting constants (conservative across v5e / v6e / v7x).
_VMEM_LIMIT_BYTES = 32 << 20      # explicit scoped-VMEM limit we request
_VMEM_INPUT_BUDGET = 24 << 20     # budget for the double-buffered x blocks
_MAX_BATCH_TILE = 512             # beyond this, per-step traffic already >> step overhead


def _padded_block_bytes_per_batch(seq, d, itemsize):
    """Real VMEM footprint of one (1, seq, d) block after (8,128) layout padding."""
    pad_seq = -(-seq // 8) * 8          # sublane padding
    pad_d = -(-d // 128) * 128          # lane padding
    return pad_seq * pad_d * itemsize


def _pick_batch_tile(B, seq, d, itemsize):
    """Choose (tb, num_steps) so per-step HBM traffic is large enough to hide the
    ~0.35 us grid-step overhead while the double-buffered input stays in VMEM."""
    per_batch = _padded_block_bytes_per_batch(seq, d, itemsize)
    cap = _VMEM_INPUT_BUDGET // (2 * per_batch)   # 2 = double buffering of x
    cap = max(8, (cap // 8) * 8)                  # tile must be 8-aligned when tb < B
    cap = min(cap, _MAX_BATCH_TILE)
    if B <= cap:
        return B, 1                               # single grid step: whole batch resident
    return cap, pl.cdiv(B, cap)


def classify_kernel(x_ref, w_ref, b_ref, o_ref):
    # x_ref: (TB, P, D) VMEM block (f32 or bf16)
    # w_ref: (1, D)     VMEM (full classifier weight row, no transpose needed)
    # b_ref: (1,)       SMEM scalar bias (f32)
    # o_ref: (TB, P)    VMEM output block (trailing 1-dim added in wrapper)
    x = x_ref[...].astype(jnp.float32)              # upcast immediately (no bf16 math on v5e)
    w = w_ref[...].astype(jnp.float32)              # (1, D) -> broadcasts over (TB, P, D)
    bias = b_ref[0]

    # Linear(d_model -> 1): out[b, p] = sum_d x[b, p, d] * w[0, d] + bias   (f32 accumulate)
    out = jnp.sum(x * w, axis=-1) + bias            # (TB, P)
    o_ref[...] = out.astype(o_ref.dtype)


def classify_forward(x, weight, bias, *, batch_tile=None):
    """x: (B, P, d_model) f32 or bf16; weight: (1, d_model) f32; bias: (1,) f32.

    Returns (B, P, 1) in x.dtype, matching nn.Linear(d_model, 1).
    `batch_tile` overrides the auto-picked tile (callers may sweep it)."""
    B, seq, d = x.shape
    assert weight.shape == (1, d)
    assert bias.shape == (1,)

    itemsize = jnp.dtype(x.dtype).itemsize
    if batch_tile is None:
        tb, n_steps = _pick_batch_tile(B, seq, d, itemsize)
    else:
        tb = min(batch_tile, B)
        if tb < B:
            tb = max(8, (tb // 8) * 8)             # second-to-last out dim must be 8-aligned
        n_steps = pl.cdiv(B, tb)

    weight = weight.astype(jnp.float32)
    bias = bias.astype(jnp.float32)

    out2d = pl.pallas_call(
        classify_kernel,
        out_shape=jax.ShapeDtypeStruct((B, seq), x.dtype),
        grid_spec=pltpu.PrefetchScalarGridSpec(
            num_scalar_prefetch=0,
            grid=(n_steps,),
            in_specs=[
                pl.BlockSpec((tb, seq, d), lambda b: (b, 0, 0)),
                pl.BlockSpec((1, d), lambda b: (0, 0)),
                pl.BlockSpec(memory_space=pltpu.MemorySpace.SMEM),  # bias scalar
            ],
            out_specs=pl.BlockSpec((tb, seq), lambda b: (b, 0)),
        ),
        compiler_params=pltpu.CompilerParams(
            dimension_semantics=("parallel",),
            vmem_limit_bytes=_VMEM_LIMIT_BYTES,
        ),
    )(x, weight, bias)

    # Match nn.Linear(d_model, 1) output shape (B, P, 1).
    return out2d[..., None]


def classify_reference(x, weight, bias):
    # Plain-JAX mirror of the PyTorch forward: x @ W.T + b
    return (jnp.einsum('bpd,od->bpo', x.astype(jnp.float32),
                       weight.astype(jnp.float32)) + bias).astype(x.dtype)


if __name__ == "__main__":
    key = jax.random.PRNGKey(0)
    kx, kw, kb = jax.random.split(key, 3)

    seq = P                     # 81 (nodes * nodes)

    # Deterministic params mirroring nn.Linear's default U(-1/sqrt(fan_in), 1/sqrt(fan_in)).
    bound = 1.0 / np.sqrt(D_MODEL)
    weight = jax.random.uniform(kw, (1, D_MODEL), jnp.float32, -bound, bound)
    bias = jax.random.uniform(kb, (1,), jnp.float32, -bound, bound)

    # Case 1: B = 16 -> single grid step (whole batch resident in one block).
    B = 16
    x = jax.random.normal(kx, (B, seq, D_MODEL), jnp.float32)
    out = jax.block_until_ready(classify_forward(x, weight, bias))
    ref = classify_reference(x, weight, bias)
    np.testing.assert_allclose(np.asarray(out), np.asarray(ref), rtol=1e-5, atol=1e-5)

    # Case 2: awkward batch size (B = 20, not 8-aligned) still collapses to one step.
    B2 = 20
    x2 = jax.random.normal(jax.random.PRNGKey(1), (B2, seq, D_MODEL), jnp.float32)
    out2 = jax.block_until_ready(classify_forward(x2, weight, bias))
    ref2 = classify_reference(x2, weight, bias)
    np.testing.assert_allclose(np.asarray(out2), np.asarray(ref2), rtol=1e-5, atol=1e-5)

    print("KERNEL_OK")
</pallas_src>

<mosaic_0001>
module attributes {stable_mosaic.version = 11 : i64} {
  func.func @classify_kernel(%arg0: i32, %arg1: memref<16x81x32xf32, #tpu.memory_space<vmem>>, %arg2: memref<1x32xf32, #tpu.memory_space<vmem>>, %arg3: memref<1xf32, #tpu.memory_space<smem>>, %arg4: memref<16x81xf32, #tpu.memory_space<vmem>>) attributes {dimension_semantics = [#tpu.dimension_semantics<parallel>], iteration_bounds = array<i64: 1>, scalar_prefetch = 0 : i64, scratch_operands = 0 : i64, tpu.core_type = #tpu.core_type<tc>, window_params = [{transform_indices = @transform_0, window_bounds = array<i64: 16, 81, 32>}, {pipeline_mode = #tpu.pipeline_mode<synchronous>, transform_indices = @transform_1, window_bounds = array<i64: 1, 32>}, {transform_indices = @transform_2, window_bounds = array<i64: 1>}, {transform_indices = @transform_3, window_bounds = array<i64: 16, 81>}]} {
    %c0 = arith.constant 0 : index
    %c0_0 = arith.constant 0 : index
    %c0_1 = arith.constant 0 : index
    %0 = vector.load %arg1[%c0, %c0_0, %c0_1] : memref<16x81x32xf32, #tpu.memory_space<vmem>>, vector<16x81x32xf32>
    %c0_2 = arith.constant 0 : index
    %c0_3 = arith.constant 0 : index
    %1 = vector.load %arg2[%c0_2, %c0_3] : memref<1x32xf32, #tpu.memory_space<vmem>>, vector<1x32xf32>
    %c0_4 = arith.constant 0 : index
    %2 = memref.load %arg3[%c0_4] : memref<1xf32, #tpu.memory_space<smem>>
    %3 = vector.shape_cast %1 : vector<1x32xf32> to vector<1x1x32xf32>
    %4 = vector.broadcast %3 : vector<1x1x32xf32> to vector<16x81x32xf32>
    %5 = arith.mulf %0, %4 : vector<16x81x32xf32>
    %cst = arith.constant dense<0.000000e+00> : vector<16x81xf32>
    %6 = vector.multi_reduction <add>, %5, %cst [2] : vector<16x81x32xf32> to vector<16x81xf32>
    %7 = vector.broadcast %2 : f32 to vector<16x81xf32>
    %8 = arith.addf %6, %7 : vector<16x81xf32>
    %c0_5 = arith.constant 0 : index
    %c0_6 = arith.constant 0 : index
    %9 = vector.load %arg4[%c0_5, %c0_6] : memref<16x81xf32, #tpu.memory_space<vmem>>, vector<16x81xf32>
    tpu.vector_store %arg4[%c0_5, %c0_6], %8 {strides = array<i32>} : memref<16x81xf32, #tpu.memory_space<vmem>>, vector<16x81xf32>,
    return
  }
  func.func @transform_0(%arg0: i32) -> (i32, i32, i32) {
    %c0_i32 = arith.constant 0 : i32
    %c0_i32_0 = arith.constant 0 : i32
    %c0_i32_1 = arith.constant 0 : i32
    return %arg0, %c0_i32, %c0_i32_0 : i32, i32, i32
  }
  func.func @transform_1(%arg0: i32) -> (i32, i32) {
    %c0_i32 = arith.constant 0 : i32
    %c0_i32_0 = arith.constant 0 : i32
    %c0_i32_1 = arith.constant 0 : i32
    return %c0_i32, %c0_i32_0 : i32, i32
  }
  func.func @transform_2(%arg0: i32) -> i32 {
    %c0_i32 = arith.constant 0 : i32
    %c0_i32_0 = arith.constant 0 : i32
    return %c0_i32 : i32
  }
  func.func @transform_3(%arg0: i32) -> (i32, i32) {
    %c0_i32 = arith.constant 0 : i32
    %c0_i32_0 = arith.constant 0 : i32
    return %arg0, %c0_i32 : i32, i32
  }
}

</mosaic_0001>

<llo_original>
// kernel: tpu_custom_call.1
$region0: #{tpu_custom_call.1}
  #allocation0 [shape = 'u32[]', space=smem, size = 0x4, offset = 0x4, fixed_abs, tag = 'smem constant byte address 0x4 - core index']
  #allocation1 [shape = 'u32[144,128]{1,0:T(1,128)}', space=vmem, size = 0x12000, scoped, tag = 'internal scratch']
  #allocation2 [shape = 'f32[1]{0:T(128)S(6)}', space=smem, size = 0x200, scoped, tag = 'scoped memory for tpu_custom_call.1']
  %s0 = inlined_call_operand.vmem [shape: f32[16,81,32], index: 0, kind: input, shape index: {}]
  %s1 = inlined_call_operand.vmem [shape: f32[1,32], index: 1, kind: input, shape index: {}]
  %s2 = inlined_call_operand.<no memory space> [shape: f32[1], index: 2, kind: input, shape index: {}]
  %s3 = inlined_call_operand.hbm [shape: f32[16,81], index: 3, kind: output, shape index: {}]
  %s4 = sld [smem:[#allocation0]]
  $region22: #{tpu_custom_call.1} parent=0
    _
  %s6 = ssub.s32 1, %s4
  %s7 = scalar_select 0, %s6, %s4
  %8 = sst [smem:[#allocation2]] %s2
  $region1: #{tpu_custom_call.1} parent=0
    #allocation3 [shape = 'u8[8192]{0}', space=vmem, size = 0x2000, scoped, tag = 'output window, operand 0, single buffered']
    #allocation4 [shape = 's32[1]{0}', space=sflag, size = 0x4, scoped, tag = 'scoped memory for tpu_custom_call.1']
    %9 = vsyncpa [#allocation4], 0
    // Predicated region
    $region2: #{tpu_custom_call.1} parent=1 // pred_check
      _
    $region3: #{tpu_custom_call.1} parent=1 // pred_check_branch
      %11 = sbr.rel (0) target = $region5
    $region4: #{tpu_custom_call.1} parent=1 // pred_region
      _
    $region5: #{tpu_custom_call.1} parent=1 // pred_fallthru
      _
    // Predicated region
    $region6: #{tpu_custom_call.1} parent=1 // pred_check
      _
    $region7: #{tpu_custom_call.1} parent=1 // pred_check_branch
      %13 = sbr.rel (0) target = $region9
    $region8: #{tpu_custom_call.1} parent=1 // pred_region
      _
    $region9: #{tpu_custom_call.1} parent=1 // pred_fallthru
      _
    // Predicated region
    $region10: #{tpu_custom_call.1} parent=1 // pred_check
      _
    $region11: #{tpu_custom_call.1} parent=1 // pred_check_branch
      %15 = sbr.rel (0) target = $region13
    $region12: #{tpu_custom_call.1} parent=1 // pred_region
      _
    $region13: #{tpu_custom_call.1} parent=1 // pred_fallthru
      _
    %v16 = vld [vmem:[%s0] sm:$0xff]
    %v17 = vld [vmem:[%s0 + $0x8] sm:$0xff]
    %v18 = vld [vmem:[%s0 + $0x10] sm:$0xff]
    %v19 = vld [vmem:[%s0 + $0x18] sm:$0xff]
    %v20 = vld [vmem:[%s0 + $0x20] sm:$0xff]
    %v21 = vld [vmem:[%s0 + $0x28] sm:$0xff]
    %v22 = vld [vmem:[%s0 + $0x30] sm:$0xff]
    %v23 = vld [vmem:[%s0 + $0x38] sm:$0xff]
    %v24 = vld [vmem:[%s0 + $0x40] sm:$0xff]
    %v25 = vld [vmem:[%s0 + $0x48] sm:$0xff]
    %v26 = vld [vmem:[%s0 + $0x50] sm:$0x1]
    %v27 = vld [vmem:[%s0 + $0x58] sm:$0xff]
    %v28 = vld [vmem:[%s0 + $0x60] sm:$0xff]
    %v29 = vld [vmem:[%s0 + $0x68] sm:$0xff]
    %v30 = vld [vmem:[%s0 + $0x70] sm:$0xff]
    %v31 = vld [vmem:[%s0 + $0x78] sm:$0xff]
    %v32 = vld [vmem:[%s0 + $0x80] sm:$0xff]
    %v33 = vld [vmem:[%s0 + $0x88] sm:$0xff]
    %v34 = vld [vmem:[%s0 + $0x90] sm:$0xff]
    %v35 = vld [vmem:[%s0 + $0x98] sm:$0xff]
    %v36 = vld [vmem:[%s0 + $0xa0] sm:$0xff]
    %v37 = vld [vmem:[%s0 + $0xa8] sm:$0x1]
    %v38 = vld [vmem:[%s0 + $0xb0] sm:$0xff]
    %v39 = vld [vmem:[%s0 + $0xb8] sm:$0xff]
    %v40 = vld [vmem:[%s0 + $0xc0] sm:$0xff]
    %v41 = vld [vmem:[%s0 + $0xc8] sm:$0xff]
    %v42 = vld [vmem:[%s0 + $0xd0] sm:$0xff]
    %v43 = vld [vmem:[%s0 + $0xd8] sm:$0xff]
    %v44 = vld [vmem:[%s0 + $0xe0] sm:$0xff]
    %v45 = vld [vmem:[%s0 + $0xe8] sm:$0xff]
    %v46 = vld [vmem:[%s0 + $0xf0] sm:$0xff]
    %v47 = vld [vmem:[%s0 + $0xf8] sm:$0xff]
    %v48 = vld [vmem:[%s0 + $0x100] sm:$0x1]
    %v49 = vld [vmem:[%s0 + $0x108] sm:$0xff]
    %v50 = vld [vmem:[%s0 + $0x110] sm:$0xff]
    %v51 = vld [vmem:[%s0 + $0x118] sm:$0xff]
    %v52 = vld [vmem:[%s0 + $0x120] sm:$0xff]
    %v53 = vld [vmem:[%s0 + $0x128] sm:$0xff]
    %v54 = vld [vmem:[%s0 + $0x130] sm:$0xff]
    %v55 = vld [vmem:[%s0 + $0x138] sm:$0xff]
    %v56 = vld [vmem:[%s0 + $0x140] sm:$0xff]
    %v57 = vld [vmem:[%s0 + $0x148] sm:$0xff]
    %v58 = vld [vmem:[%s0 + $0x150] sm:$0xff]
    %v59 = vld [vmem:[%s0 + $0x158] sm:$0x1]
    %v60 = vld [vmem:[%s0 + $0x160] sm:$0xff]
    %v61 = vld [vmem:[%s0 + $0x168] sm:$0xff]
    %v62 = vld [vmem:[%s0 + $0x170] sm:$0xff]
    %v63 = vld [vmem:[%s0 + $0x178] sm:$0xff]
    %v64 = vld [vmem:[%s0 + $0x180] sm:$0xff]
    %v65 = vld [vmem:[%s0 + $0x188] sm:$0xff]
    %v66 = vld [vmem:[%s0 + $0x190] sm:$0xff]
    %v67 = vld [vmem:[%s0 + $0x198] sm:$0xff]
    %v68 = vld [vmem:[%s0 + $0x1a0] sm:$0xff]
    %v69 = vld [vmem:[%s0 + $0x1a8] sm:$0xff]
    %v70 = vld [vmem:[%s0 + $0x1b0] sm:$0x1]
    %v71 = vld [vmem:[%s0 + $0x1b8] sm:$0xff]
    %v72 = vld [vmem:[%s0 + $0x1c0] sm:$0xff]
    %v73 = vld [vmem:[%s0 + $0x1c8] sm:$0xff]
    %v74 = vld [vmem:[%s0 + $0x1d0] sm:$0xff]
    %v75 = vld [vmem:[%s0 + $0x1d8] sm:$0xff]
    %v76 = vld [vmem:[%s0 + $0x1e0] sm:$0xff]
    %v77 = vld [vmem:[%s0 + $0x1e8] sm:$0xff]
    %v78 = vld [vmem:[%s0 + $0x1f0] sm:$0xff]
    %v79 = vld [vmem:[%s0 + $0x1f8] sm:$0xff]
    %v80 = vld [vmem:[%s0 + $0x200] sm:$0xff]
    %v81 = vld [vmem:[%s0 + $0x208] sm:$0x1]
    %v82 = vld [vmem:[%s0 + $0x210] sm:$0xff]
    %v83 = vld [vmem:[%s0 + $0x218] sm:$0xff]
    %v84 = vld [vmem:[%s0 + $0x220] sm:$0xff]
    %v85 = vld [vmem:[%s0 + $0x228] sm:$0xff]
    %v86 = vld [vmem:[%s0 + $0x230] sm:$0xff]
    %v87 = vld [vmem:[%s0 + $0x238] sm:$0xff]
    %v88 = vld [vmem:[%s0 + $0x240] sm:$0xff]
    %v89 = vld [vmem:[%s0 + $0x248] sm:$0xff]
    %v90 = vld [vmem:[%s0 + $0x250] sm:$0xff]
    %v91 = vld [vmem:[%s0 + $0x258] sm:$0xff]
    %v92 = vld [vmem:[%s0 + $0x260] sm:$0x1]
    %v93 = vld [vmem:[%s0 + $0x268] sm:$0xff]
    %v94 = vld [vmem:[%s0 + $0x270] sm:$0xff]
    %v95 = vld [vmem:[%s0 + $0x278] sm:$0xff]
    %v96 = vld [vmem:[%s0 + $0x280] sm:$0xff]
    %v97 = vld [vmem:[%s0 + $0x288] sm:$0xff]
    %v98 = vld [vmem:[%s0 + $0x290] sm:$0xff]
    %v99 = vld [vmem:[%s0 + $0x298] sm:$0xff]
    %v100 = vld [vmem:[%s0 + $0x2a0] sm:$0xff]
    %v101 = vld [vmem:[%s0 + $0x2a8] sm:$0xff]
    %v102 = vld [vmem:[%s0 + $0x2b0] sm:$0xff]
    %v103 = vld [vmem:[%s0 + $0x2b8] sm:$0x1]
    %v104 = vld [vmem:[%s0 + $0x2c0] sm:$0xff]
    %v105 = vld [vmem:[%s0 + $0x2c8] sm:$0xff]
    %v106 = vld [vmem:[%s0 + $0x2d0] sm:$0xff]
    %v107 = vld [vmem:[%s0 + $0x2d8] sm:$0xff]
    %v108 = vld [vmem:[%s0 + $0x2e0] sm:$0xff]
    %v109 = vld [vmem:[%s0 + $0x2e8] sm:$0xff]
    %v110 = vld [vmem:[%s0 + $0x2f0] sm:$0xff]
    %v111 = vld [vmem:[%s0 + $0x2f8] sm:$0xff]
    %v112 = vld [vmem:[%s0 + $0x300] sm:$0xff]
    %v113 = vld [vmem:[%s0 + $0x308] sm:$0xff]
    %v114 = vld [vmem:[%s0 + $0x310] sm:$0x1]
    %v115 = vld [vmem:[%s0 + $0x318] sm:$0xff]
    %v116 = vld [vmem:[%s0 + $0x320] sm:$0xff]
    %v117 = vld [vmem:[%s0 + $0x328] sm:$0xff]
    %v118 = vld [vmem:[%s0 + $0x330] sm:$0xff]
    %v119 = vld [vmem:[%s0 + $0x338] sm:$0xff]
    %v120 = vld [vmem:[%s0 + $0x340] sm:$0xff]
    %v121 = vld [vmem:[%s0 + $0x348] sm:$0xff]
    %v122 = vld [vmem:[%s0 + $0x350] sm:$0xff]
    %v123 = vld [vmem:[%s0 + $0x358] sm:$0xff]
    %v124 = vld [vmem:[%s0 + $0x360] sm:$0xff]
    %v125 = vld [vmem:[%s0 + $0x368] sm:$0x1]
    %v126 = vld [vmem:[%s0 + $0x370] sm:$0xff]
    %v127 = vld [vmem:[%s0 + $0x378] sm:$0xff]
    %v128 = vld [vmem:[%s0 + $0x380] sm:$0xff]
    %v129 = vld [vmem:[%s0 + $0x388] sm:$0xff]
    %v130 = vld [vmem:[%s0 + $0x390] sm:$0xff]
    %v131 = vld [vmem:[%s0 + $0x398] sm:$0xff]
    %v132 = vld [vmem:[%s0 + $0x3a0] sm:$0xff]
    %v133 = vld [vmem:[%s0 + $0x3a8] sm:$0xff]
    %v134 = vld [vmem:[%s0 + $0x3b0] sm:$0xff]
    %v135 = vld [vmem:[%s0 + $0x3b8] sm:$0xff]
    %v136 = vld [vmem:[%s0 + $0x3c0] sm:$0x1]
    %v137 = vld [vmem:[%s0 + $0x3c8] sm:$0xff]
    %v138 = vld [vmem:[%s0 + $0x3d0] sm:$0xff]
    %v139 = vld [vmem:[%s0 + $0x3d8] sm:$0xff]
    %v140 = vld [vmem:[%s0 + $0x3e0] sm:$0xff]
    %v141 = vld [vmem:[%s0 + $0x3e8] sm:$0xff]
    %v142 = vld [vmem:[%s0 + $0x3f0] sm:$0xff]
    %v143 = vld [vmem:[%s0 + $0x3f8] sm:$0xff]
    %v144 = vld [vmem:[%s0 + $0x400] sm:$0xff]
    %v145 = vld [vmem:[%s0 + $0x408] sm:$0xff]
    %v146 = vld [vmem:[%s0 + $0x410] sm:$0xff]
    %v147 = vld [vmem:[%s0 + $0x418] sm:$0x1]
    %v148 = vld [vmem:[%s0 + $0x420] sm:$0xff]
    %v149 = vld [vmem:[%s0 + $0x428] sm:$0xff]
    %v150 = vld [vmem:[%s0 + $0x430] sm:$0xff]
    %v151 = vld [vmem:[%s0 + $0x438] sm:$0xff]
    %v152 = vld [vmem:[%s0 + $0x440] sm:$0xff]
    %v153 = vld [vmem:[%s0 + $0x448] sm:$0xff]
    %v154 = vld [vmem:[%s0 + $0x450] sm:$0xff]
    %v155 = vld [vmem:[%s0 + $0x458] sm:$0xff]
    %v156 = vld [vmem:[%s0 + $0x460] sm:$0xff]
    %v157 = vld [vmem:[%s0 + $0x468] sm:$0xff]
    %v158 = vld [vmem:[%s0 + $0x470] sm:$0x1]
    %v159 = vld [vmem:[%s0 + $0x478] sm:$0xff]
    %v160 = vld [vmem:[%s0 + $0x480] sm:$0xff]
    %v161 = vld [vmem:[%s0 + $0x488] sm:$0xff]
    %v162 = vld [vmem:[%s0 + $0x490] sm:$0xff]
    %v163 = vld [vmem:[%s0 + $0x498] sm:$0xff]
    %v164 = vld [vmem:[%s0 + $0x4a0] sm:$0xff]
    %v165 = vld [vmem:[%s0 + $0x4a8] sm:$0xff]
    %v166 = vld [vmem:[%s0 + $0x4b0] sm:$0xff]
    %v167 = vld [vmem:[%s0 + $0x4b8] sm:$0xff]
    %v168 = vld [vmem:[%s0 + $0x4c0] sm:$0xff]
    %v169 = vld [vmem:[%s0 + $0x4c8] sm:$0x1]
    %v170 = vld [vmem:[%s0 + $0x4d0] sm:$0xff]
    %v171 = vld [vmem:[%s0 + $0x4d8] sm:$0xff]
    %v172 = vld [vmem:[%s0 + $0x4e0] sm:$0xff]
    %v173 = vld [vmem:[%s0 + $0x4e8] sm:$0xff]
    %v174 = vld [vmem:[%s0 + $0x4f0] sm:$0xff]
    %v175 = vld [vmem:[%s0 + $0x4f8] sm:$0xff]
    %v176 = vld [vmem:[%s0 + $0x500] sm:$0xff]
    %v177 = vld [vmem:[%s0 + $0x508] sm:$0xff]
    %v178 = vld [vmem:[%s0 + $0x510] sm:$0xff]
    %v179 = vld [vmem:[%s0 + $0x518] sm:$0xff]
    %v180 = vld [vmem:[%s0 + $0x520] sm:$0x1]
    %v181 = vld [vmem:[%s0 + $0x528] sm:$0xff]
    %v182 = vld [vmem:[%s0 + $0x530] sm:$0xff]
    %v183 = vld [vmem:[%s0 + $0x538] sm:$0xff]
    %v184 = vld [vmem:[%s0 + $0x540] sm:$0xff]
    %v185 = vld [vmem:[%s0 + $0x548] sm:$0xff]
    %v186 = vld [vmem:[%s0 + $0x550] sm:$0xff]
    %v187 = vld [vmem:[%s0 + $0x558] sm:$0xff]
    %v188 = vld [vmem:[%s0 + $0x560] sm:$0xff]
    %v189 = vld [vmem:[%s0 + $0x568] sm:$0xff]
    %v190 = vld [vmem:[%s0 + $0x570] sm:$0xff]
    %v191 = vld [vmem:[%s0 + $0x578] sm:$0x1]
    %v192 = vld [vmem:[%s1] sm:$0x1]
    %s193 = sld [smem:[#allocation2]]
    %v195 = vlaneseq
    %v196 = vshrl.u32 %v195, 7
    %v197 = vsub.s32 0, %v196
    %v198 = vrot.slane %v192, %v197
    %v200 = vmul.f32 %v16, %v198
    %v201 = vmul.f32 %v17, %v198
    %v202 = vmul.f32 %v18, %v198
    %v203 = vmul.f32 %v19, %v198
    %v204 = vmul.f32 %v20, %v198
    %v205 = vmul.f32 %v21, %v198
    %v206 = vmul.f32 %v22, %v198
    %v207 = vmul.f32 %v23, %v198
    %v208 = vmul.f32 %v24, %v198
    %v209 = vmul.f32 %v25, %v198
    %v210 = vmul.f32 %v26, %v198
    %v211 = vmul.f32 %v27, %v198
    %v212 = vmul.f32 %v28, %v198
    %v213 = vmul.f32 %v29, %v198
    %v214 = vmul.f32 %v30, %v198
    %v215 = vmul.f32 %v31, %v198
    %v216 = vmul.f32 %v32, %v198
    %v217 = vmul.f32 %v33, %v198
    %v218 = vmul.f32 %v34, %v198
    %v219 = vmul.f32 %v35, %v198
    %v220 = vmul.f32 %v36, %v198
    %v221 = vmul.f32 %v37, %v198
    %v222 = vmul.f32 %v38, %v198
    %v223 = vmul.f32 %v39, %v198
    %v224 = vmul.f32 %v40, %v198
    %v225 = vmul.f32 %v41, %v198
    %v226 = vmul.f32 %v42, %v198
    %v227 = vmul.f32 %v43, %v198
    %v228 = vmul.f32 %v44, %v198
    %v229 = vmul.f32 %v45, %v198
    %v230 = vmul.f32 %v46, %v198
    %v231 = vmul.f32 %v47, %v198
    %v232 = vmul.f32 %v48, %v198
    %v233 = vmul.f32 %v49, %v198
    %v234 = vmul.f32 %v50, %v198
    %v235 = vmul.f32 %v51, %v198
    %v236 = vmul.f32 %v52, %v198
    %v237 = vmul.f32 %v53, %v198
    %v238 = vmul.f32 %v54, %v198
    %v239 = vmul.f32 %v55, %v198
    %v240 = vmul.f32 %v56, %v198
    %v241 = vmul.f32 %v57, %v198
    %v242 = vmul.f32 %v58, %v198
    %v243 = vmul.f32 %v59, %v198
    %v244 = vmul.f32 %v60, %v198
    %v245 = vmul.f32 %v61, %v198
    %v246 = vmul.f32 %v62, %v198
    %v247 = vmul.f32 %v63, %v198
    %v248 = vmul.f32 %v64, %v198
    %v249 = vmul.f32 %v65, %v198
    %v250 = vmul.f32 %v66, %v198
    %v251 = vmul.f32 %v67, %v198
    %v252 = vmul.f32 %v68, %v198
    %v253 = vmul.f32 %v69, %v198
    %v254 = vmul.f32 %v70, %v198
    %v255 = vmul.f32 %v71, %v198
    %v256 = vmul.f32 %v72, %v198
    %v257 = vmul.f32 %v73, %v198
    %v258 = vmul.f32 %v74, %v198
    %v259 = vmul.f32 %v75, %v198
    %v260 = vmul.f32 %v76, %v198
    %v261 = vmul.f32 %v77, %v198
    %v262 = vmul.f32 %v78, %v198
    %v263 = vmul.f32 %v79, %v198
    %v264 = vmul.f32 %v80, %v198
    %v265 = vmul.f32 %v81, %v198
    %v266 = vmul.f32 %v82, %v198
    %v267 = vmul.f32 %v83, %v198
    %v268 = vmul.f32 %v84, %v198
    %v269 = vmul.f32 %v85, %v198
    %v270 = vmul.f32 %v86, %v198
    %v271 = vmul.f32 %v87, %v198
    %v272 = vmul.f32 %v88, %v198
    %v273 = vmul.f32 %v89, %v198
    %v274 = vmul.f32 %v90, %v198
    %v275 = vmul.f32 %v91, %v198
    %v276 = vmul.f32 %v92, %v198
    %v277 = vmul.f32 %v93, %v198
    %v278 = vmul.f32 %v94, %v198
    %v279 = vmul.f32 %v95, %v198
    %v280 = vmul.f32 %v96, %v198
    %v281 = vmul.f32 %v97, %v198
    %v282 = vmul.f32 %v98, %v198
    %v283 = vmul.f32 %v99, %v198
    %v284 = vmul.f32 %v100, %v198
    %v285 = vmul.f32 %v101, %v198
    %v286 = vmul.f32 %v102, %v198
    %v287 = vmul.f32 %v103, %v198
    %v288 = vmul.f32 %v104, %v198
    %v289 = vmul.f32 %v105, %v198
    %v290 = vmul.f32 %v106, %v198
    %v291 = vmul.f32 %v107, %v198
    %v292 = vmul.f32 %v108, %v198
    %v293 = vmul.f32 %v109, %v198
    %v294 = vmul.f32 %v110, %v198
    %v295 = vmul.f32 %v111, %v198
    %v296 = vmul.f32 %v112, %v198
    %v297 = vmul.f32 %v113, %v198
    %v298 = vmul.f32 %v114, %v198
    %v299 = vmul.f32 %v115, %v198
    %v300 = vmul.f32 %v116, %v198
    %v301 = vmul.f32 %v117, %v198
    %v302 = vmul.f32 %v118, %v198
    %v303 = vmul.f32 %v119, %v198
    %v304 = vmul.f32 %v120, %v198
    %v305 = vmul.f32 %v121, %v198
    %v306 = vmul.f32 %v122, %v198
    %v307 = vmul.f32 %v123, %v198
    %v308 = vmul.f32 %v124, %v198
    %v309 = vmul.f32 %v125, %v198
    %v310 = vmul.f32 %v126, %v198
    %v311 = vmul.f32 %v127, %v198
    %v312 = vmul.f32 %v128, %v198
    %v313 = vmul.f32 %v129, %v198
    %v314 = vmul.f32 %v130, %v198
    %v315 = vmul.f32 %v131, %v198
    %v316 = vmul.f32 %v132, %v198
    %v317 = vmul.f32 %v133, %v198
    %v318 = vmul.f32 %v134, %v198
    %v319 = vmul.f32 %v135, %v198
    %v320 = vmul.f32 %v136, %v198
    %v321 = vmul.f32 %v137, %v198
    %v322 = vmul.f32 %v138, %v198
    %v323 = vmul.f32 %v139, %v198
    %v324 = vmul.f32 %v140, %v198
    %v325 = vmul.f32 %v141, %v198
    %v326 = vmul.f32 %v142, %v198
    %v327 = vmul.f32 %v143, %v198
    %v328 = vmul.f32 %v144, %v198
    %v329 = vmul.f32 %v145, %v198
    %v330 = vmul.f32 %v146, %v198
    %v331 = vmul.f32 %v147, %v198
    %v332 = vmul.f32 %v148, %v198
    %v333 = vmul.f32 %v149, %v198
    %v334 = vmul.f32 %v150, %v198
    %v335 = vmul.f32 %v151, %v198
    %v336 = vmul.f32 %v152, %v198
    %v337 = vmul.f32 %v153, %v198
    %v338 = vmul.f32 %v154, %v198
    %v339 = vmul.f32 %v155, %v198
    %v340 = vmul.f32 %v156, %v198
    %v341 = vmul.f32 %v157, %v198
    %v342 = vmul.f32 %v158, %v198
    %v343 = vmul.f32 %v159, %v198
    %v344 = vmul.f32 %v160, %v198
    %v345 = vmul.f32 %v161, %v198
    %v346 = vmul.f32 %v162, %v198
    %v347 = vmul.f32 %v163, %v198
    %v348 = vmul.f32 %v164, %v198
    %v349 = vmul.f32 %v165, %v198
    %v350 = vmul.f32 %v166, %v198
    %v351 = vmul.f32 %v167, %v198
    %v352 = vmul.f32 %v168, %v198
    %v353 = vmul.f32 %v169, %v198
    %v354 = vmul.f32 %v170, %v198
    %v355 = vmul.f32 %v171, %v198
    %v356 = vmul.f32 %v172, %v198
    %v357 = vmul.f32 %v173, %v198
    %v358 = vmul.f32 %v174, %v198
    %v359 = vmul.f32 %v175, %v198
    %v360 = vmul.f32 %v176, %v198
    %v361 = vmul.f32 %v177, %v198
    %v362 = vmul.f32 %v178, %v198
    %v363 = vmul.f32 %v179, %v198
    %v364 = vmul.f32 %v180, %v198
    %v365 = vmul.f32 %v181, %v198
    %v366 = vmul.f32 %v182, %v198
    %v367 = vmul.f32 %v183, %v198
    %v368 = vmul.f32 %v184, %v198
    %v369 = vmul.f32 %v185, %v198
    %v370 = vmul.f32 %v186, %v198
    %v371 = vmul.f32 %v187, %v198
    %v372 = vmul.f32 %v188, %v198
    %v373 = vmul.f32 %v189, %v198
    %v374 = vmul.f32 %v190, %v198
    %v375 = vmul.f32 %v191, %v198
    %vm376 = vcmask 261120
    %v377 = vsel %vm376, %v200, 0.0
    %378 = vadd.xlane.f32.xlu0 %v377
    %v379 = vpop.xlane.xlu0 %378
    %v380 = vsel %vm376, %v201, 0.0
    %381 = vadd.xlane.f32.xlu0 %v380
    %v382 = vpop.xlane.xlu0 %381
    %v383 = vsel %vm376, %v202, 0.0
    %384 = vadd.xlane.f32.xlu0 %v383
    %v385 = vpop.xlane.xlu0 %384
    %v386 = vsel %vm376, %v203, 0.0
    %387 = vadd.xlane.f32.xlu0 %v386
    %v388 = vpop.xlane.xlu0 %387
    %v389 = vsel %vm376, %v204, 0.0
    %390 = vadd.xlane.f32.xlu0 %v389
    %v391 = vpop.xlane.xlu0 %390
    %v392 = vsel %vm376, %v205, 0.0
    %393 = vadd.xlane.f32.xlu0 %v392
    %v394 = vpop.xlane.xlu0 %393
    %v395 = vsel %vm376, %v206, 0.0
    %396 = vadd.xlane.f32.xlu0 %v395
    %v397 = vpop.xlane.xlu0 %396
    %v398 = vsel %vm376, %v207, 0.0
    %399 = vadd.xlane.f32.xlu0 %v398
    %v400 = vpop.xlane.xlu0 %399
    %v401 = vsel %vm376, %v208, 0.0
    %402 = vadd.xlane.f32.xlu0 %v401
    %v403 = vpop.xlane.xlu0 %402
    %v404 = vsel %vm376, %v209, 0.0
    %405 = vadd.xlane.f32.xlu0 %v404
    %v406 = vpop.xlane.xlu0 %405
    %vm407 = vcmask 253952
    %v408 = vsel %vm407, %v210, 0.0
    %409 = vadd.xlane.f32.xlu0 %v408
    %v410 = vpop.xlane.xlu0 %409
    %v411 = vsel %vm376, %v211, 0.0
    %412 = vadd.xlane.f32.xlu0 %v411
    %v413 = vpop.xlane.xlu0 %412
    %v414 = vsel %vm376, %v212, 0.0
    %415 = vadd.xlane.f32.xlu0 %v414
    %v416 = vpop.xlane.xlu0 %415
    %v417 = vsel %vm376, %v213, 0.0
    %418 = vadd.xlane.f32.xlu0 %v417
    %v419 = vpop.xlane.xlu0 %418
    %v420 = vsel %vm376, %v214, 0.0
    %421 = vadd.xlane.f32.xlu0 %v420
    %v422 = vpop.xlane.xlu0 %421
    %v423 = vsel %vm376, %v215, 0.0
    %424 = vadd.xlane.f32.xlu0 %v423
    %v425 = vpop.xlane.xlu0 %424
    %v426 = vsel %vm376, %v216, 0.0
    %427 = vadd.xlane.f32.xlu0 %v426
    %v428 = vpop.xlane.xlu0 %427
    %v429 = vsel %vm376, %v217, 0.0
    %430 = vadd.xlane.f32.xlu0 %v429
    %v431 = vpop.xlane.xlu0 %430
    %v432 = vsel %vm376, %v218, 0.0
    %433 = vadd.xlane.f32.xlu0 %v432
    %v434 = vpop.xlane.xlu0 %433
    %v435 = vsel %vm376, %v219, 0.0
    %436 = vadd.xlane.f32.xlu0 %v435
    %v437 = vpop.xlane.xlu0 %436
    %v438 = vsel %vm376, %v220, 0.0
    %439 = vadd.xlane.f32.xlu0 %v438
    %v440 = vpop.xlane.xlu0 %439
    %v441 = vsel %vm407, %v221, 0.0
    %442 = vadd.xlane.f32.xlu0 %v441
    %v443 = vpop.xlane.xlu0 %442
    %v444 = vsel %vm376, %v222, 0.0
    %445 = vadd.xlane.f32.xlu0 %v444
    %v446 = vpop.xlane.xlu0 %445
    %v447 = vsel %vm376, %v223, 0.0
    %448 = vadd.xlane.f32.xlu0 %v447
    %v449 = vpop.xlane.xlu0 %448
    %v450 = vsel %vm376, %v224, 0.0
    %451 = vadd.xlane.f32.xlu0 %v450
    %v452 = vpop.xlane.xlu0 %451
    %v453 = vsel %vm376, %v225, 0.0
    %454 = vadd.xlane.f32.xlu0 %v453
    %v455 = vpop.xlane.xlu0 %454
    %v456 = vsel %vm376, %v226, 0.0
    %457 = vadd.xlane.f32.xlu0 %v456
    %v458 = vpop.xlane.xlu0 %457
    %v459 = vsel %vm376, %v227, 0.0
    %460 = vadd.xlane.f32.xlu0 %v459
    %v461 = vpop.xlane.xlu0 %460
    %v462 = vsel %vm376, %v228, 0.0
    %463 = vadd.xlane.f32.xlu0 %v462
    %v464 = vpop.xlane.xlu0 %463
    %v465 = vsel %vm376, %v229, 0.0
    %466 = vadd.xlane.f32.xlu0 %v465
    %v467 = vpop.xlane.xlu0 %466
    %v468 = vsel %vm376, %v230, 0.0
    %469 = vadd.xlane.f32.xlu0 %v468
    %v470 = vpop.xlane.xlu0 %469
    %v471 = vsel %vm376, %v231, 0.0
    %472 = vadd.xlane.f32.xlu0 %v471
    %v473 = vpop.xlane.xlu0 %472
    %v474 = vsel %vm407, %v232, 0.0
    %475 = vadd.xlane.f32.xlu0 %v474
    %v476 = vpop.xlane.xlu0 %475
    %v477 = vsel %vm376, %v233, 0.0
    %478 = vadd.xlane.f32.xlu0 %v477
    %v479 = vpop.xlane.xlu0 %478
    %v480 = vsel %vm376, %v234, 0.0
    %481 = vadd.xlane.f32.xlu0 %v480
    %v482 = vpop.xlane.xlu0 %481
    %v483 = vsel %vm376, %v235, 0.0
    %484 = vadd.xlane.f32.xlu0 %v483
    %v485 = vpop.xlane.xlu0 %484
    %v486 = vsel %vm376, %v236, 0.0
    %487 = vadd.xlane.f32.xlu0 %v486
    %v488 = vpop.xlane.xlu0 %487
    %v489 = vsel %vm376, %v237, 0.0
    %490 = vadd.xlane.f32.xlu0 %v489
    %v491 = vpop.xlane.xlu0 %490
    %v492 = vsel %vm376, %v238, 0.0
    %493 = vadd.xlane.f32.xlu0 %v492
    %v494 = vpop.xlane.xlu0 %493
    %v495 = vsel %vm376, %v239, 0.0
    %496 = vadd.xlane.f32.xlu0 %v495
    %v497 = vpop.xlane.xlu0 %496
    %v498 = vsel %vm376, %v240, 0.0
    %499 = vadd.xlane.f32.xlu0 %v498
    %v500 = vpop.xlane.xlu0 %499
    %v501 = vsel %vm376, %v241, 0.0
    %502 = vadd.xlane.f32.xlu0 %v501
    %v503 = vpop.xlane.xlu0 %502
    %v504 = vsel %vm376, %v242, 0.0
    %505 = vadd.xlane.f32.xlu0 %v504
    %v506 = vpop.xlane.xlu0 %505
    %v507 = vsel %vm407, %v243, 0.0
    %508 = vadd.xlane.f32.xlu0 %v507
    %v509 = vpop.xlane.xlu0 %508
    %v510 = vsel %vm376, %v244, 0.0
    %511 = vadd.xlane.f32.xlu0 %v510
    %v512 = vpop.xlane.xlu0 %511
    %v513 = vsel %vm376, %v245, 0.0
    %514 = vadd.xlane.f32.xlu0 %v513
    %v515 = vpop.xlane.xlu0 %514
    %v516 = vsel %vm376, %v246, 0.0
    %517 = vadd.xlane.f32.xlu0 %v516
    %v518 = vpop.xlane.xlu0 %517
    %v519 = vsel %vm376, %v247, 0.0
    %520 = vadd.xlane.f32.xlu0 %v519
    %v521 = vpop.xlane.xlu0 %520
    %v522 = vsel %vm376, %v248, 0.0
    %523 = vadd.xlane.f32.xlu0 %v522
    %v524 = vpop.xlane.xlu0 %523
    %v525 = vsel %vm376, %v249, 0.0
    %526 = vadd.xlane.f32.xlu0 %v525
    %v527 = vpop.xlane.xlu0 %526
    %v528 = vsel %vm376, %v250, 0.0
    %529 = vadd.xlane.f32.xlu0 %v528
    %v530 = vpop.xlane.xlu0 %529
    %v531 = vsel %vm376, %v251, 0.0
    %532 = vadd.xlane.f32.xlu0 %v531
    %v533 = vpop.xlane.xlu0 %532
    %v534 = vsel %vm376, %v252, 0.0
    %535 = vadd.xlane.f32.xlu0 %v534
    %v536 = vpop.xlane.xlu0 %535
    %v537 = vsel %vm376, %v253, 0.0
    %538 = vadd.xlane.f32.xlu0 %v537
    %v539 = vpop.xlane.xlu0 %538
    %v540 = vsel %vm407, %v254, 0.0
    %541 = vadd.xlane.f32.xlu0 %v540
    %v542 = vpop.xlane.xlu0 %541
    %v543 = vsel %vm376, %v255, 0.0
    %544 = vadd.xlane.f32.xlu0 %v543
    %v545 = vpop.xlane.xlu0 %544
    %v546 = vsel %vm376, %v256, 0.0
    %547 = vadd.xlane.f32.xlu0 %v546
    %v548 = vpop.xlane.xlu0 %547
    %v549 = vsel %vm376, %v257, 0.0
    %550 = vadd.xlane.f32.xlu0 %v549
    %v551 = vpop.xlane.xlu0 %550
    %v552 = vsel %vm376, %v258, 0.0
    %553 = vadd.xlane.f32.xlu0 %v552
    %v554 = vpop.xlane.xlu0 %553
    %v555 = vsel %vm376, %v259, 0.0
    %556 = vadd.xlane.f32.xlu0 %v555
    %v557 = vpop.xlane.xlu0 %556
    %v558 = vsel %vm376, %v260, 0.0
    %559 = vadd.xlane.f32.xlu0 %v558
    %v560 = vpop.xlane.xlu0 %559
    %v561 = vsel %vm376, %v261, 0.0
    %562 = vadd.xlane.f32.xlu0 %v561
    %v563 = vpop.xlane.xlu0 %562
    %v564 = vsel %vm376, %v262, 0.0
    %565 = vadd.xlane.f32.xlu0 %v564
    %v566 = vpop.xlane.xlu0 %565
    %v567 = vsel %vm376, %v263, 0.0
    %568 = vadd.xlane.f32.xlu0 %v567
    %v569 = vpop.xlane.xlu0 %568
    %v570 = vsel %vm376, %v264, 0.0
    %571 = vadd.xlane.f32.xlu0 %v570
    %v572 = vpop.xlane.xlu0 %571
    %v573 = vsel %vm407, %v265, 0.0
    %574 = vadd.xlane.f32.xlu0 %v573
    %v575 = vpop.xlane.xlu0 %574
    %v576 = vsel %vm376, %v266, 0.0
    %577 = vadd.xlane.f32.xlu0 %v576
    %v578 = vpop.xlane.xlu0 %577
    %v579 = vsel %vm376, %v267, 0.0
    %580 = vadd.xlane.f32.xlu0 %v579
    %v581 = vpop.xlane.xlu0 %580
    %v582 = vsel %vm376, %v268, 0.0
    %583 = vadd.xlane.f32.xlu0 %v582
    %v584 = vpop.xlane.xlu0 %583
    %v585 = vsel %vm376, %v269, 0.0
    %586 = vadd.xlane.f32.xlu0 %v585
    %v587 = vpop.xlane.xlu0 %586
    %v588 = vsel %vm376, %v270, 0.0
    %589 = vadd.xlane.f32.xlu0 %v588
    %v590 = vpop.xlane.xlu0 %589
    %v591 = vsel %vm376, %v271, 0.0
    %592 = vadd.xlane.f32.xlu0 %v591
    %v593 = vpop.xlane.xlu0 %592
    %v594 = vsel %vm376, %v272, 0.0
    %595 = vadd.xlane.f32.xlu0 %v594
    %v596 = vpop.xlane.xlu0 %595
    %v597 = vsel %vm376, %v273, 0.0
    %598 = vadd.xlane.f32.xlu0 %v597
    %v599 = vpop.xlane.xlu0 %598
    %v600 = vsel %vm376, %v274, 0.0
    %601 = vadd.xlane.f32.xlu0 %v600
    %v602 = vpop.xlane.xlu0 %601
    %v603 = vsel %vm376, %v275, 0.0
    %604 = vadd.xlane.f32.xlu0 %v603
    %v605 = vpop.xlane.xlu0 %604
    %v606 = vsel %vm407, %v276, 0.0
    %607 = vadd.xlane.f32.xlu0 %v606
    %v608 = vpop.xlane.xlu0 %607
    %v609 = vsel %vm376, %v277, 0.0
    %610 = vadd.xlane.f32.xlu0 %v609
    %v611 = vpop.xlane.xlu0 %610
    %v612 = vsel %vm376, %v278, 0.0
    %613 = vadd.xlane.f32.xlu0 %v612
    %v614 = vpop.xlane.xlu0 %613
    %v615 = vsel %vm376, %v279, 0.0
    %616 = vadd.xlane.f32.xlu0 %v615
    %v617 = vpop.xlane.xlu0 %616
    %v618 = vsel %vm376, %v280, 0.0
    %619 = vadd.xlane.f32.xlu0 %v618
    %v620 = vpop.xlane.xlu0 %619
    %v621 = vsel %vm376, %v281, 0.0
    %622 = vadd.xlane.f32.xlu0 %v621
    %v623 = vpop.xlane.xlu0 %622
    %v624 = vsel %vm376, %v282, 0.0
    %625 = vadd.xlane.f32.xlu0 %v624
    %v626 = vpop.xlane.xlu0 %625
    %v627 = vsel %vm376, %v283, 0.0
    %628 = vadd.xlane.f32.xlu0 %v627
    %v629 = vpop.xlane.xlu0 %628
    %v630 = vsel %vm376, %v284, 0.0
    %631 = vadd.xlane.f32.xlu0 %v630
    %v632 = vpop.xlane.xlu0 %631
    %v633 = vsel %vm376, %v285, 0.0
    %634 = vadd.xlane.f32.xlu0 %v633
    %v635 = vpop.xlane.xlu0 %634
    %v636 = vsel %vm376, %v286, 0.0
    %637 = vadd.xlane.f32.xlu0 %v636
    %v638 = vpop.xlane.xlu0 %637
    %v639 = vsel %vm407, %v287, 0.0
    %640 = vadd.xlane.f32.xlu0 %v639
    %v641 = vpop.xlane.xlu0 %640
    %v642 = vsel %vm376, %v288, 0.0
    %643 = vadd.xlane.f32.xlu0 %v642
    %v644 = vpop.xlane.xlu0 %643
    %v645 = vsel %vm376, %v289, 0.0
    %646 = vadd.xlane.f32.xlu0 %v645
    %v647 = vpop.xlane.xlu0 %646
    %v648 = vsel %vm376, %v290, 0.0
    %649 = vadd.xlane.f32.xlu0 %v648
    %v650 = vpop.xlane.xlu0 %649
    %v651 = vsel %vm376, %v291, 0.0
    %652 = vadd.xlane.f32.xlu0 %v651
    %v653 = vpop.xlane.xlu0 %652
    %v654 = vsel %vm376, %v292, 0.0
    %655 = vadd.xlane.f32.xlu0 %v654
    %v656 = vpop.xlane.xlu0 %655
    %v657 = vsel %vm376, %v293, 0.0
    %658 = vadd.xlane.f32.xlu0 %v657
    %v659 = vpop.xlane.xlu0 %658
    %v660 = vsel %vm376, %v294, 0.0
    %661 = vadd.xlane.f32.xlu0 %v660
    %v662 = vpop.xlane.xlu0 %661
    %v663 = vsel %vm376, %v295, 0.0
    %664 = vadd.xlane.f32.xlu0 %v663
    %v665 = vpop.xlane.xlu0 %664
    %v666 = vsel %vm376, %v296, 0.0
    %667 = vadd.xlane.f32.xlu0 %v666
    %v668 = vpop.xlane.xlu0 %667
    %v669 = vsel %vm376, %v297, 0.0
    %670 = vadd.xlane.f32.xlu0 %v669
    %v671 = vpop.xlane.xlu0 %670
    %v672 = vsel %vm407, %v298, 0.0
    %673 = vadd.xlane.f32.xlu0 %v672
    %v674 = vpop.xlane.xlu0 %673
    %v675 = vsel %vm376, %v299, 0.0
    %676 = vadd.xlane.f32.xlu0 %v675
    %v677 = vpop.xlane.xlu0 %676
    %v678 = vsel %vm376, %v300, 0.0
    %679 = vadd.xlane.f32.xlu0 %v678
    %v680 = vpop.xlane.xlu0 %679
    %v681 = vsel %vm376, %v301, 0.0
    %682 = vadd.xlane.f32.xlu0 %v681
    %v683 = vpop.xlane.xlu0 %682
    %v684 = vsel %vm376, %v302, 0.0
    %685 = vadd.xlane.f32.xlu0 %v684
    %v686 = vpop.xlane.xlu0 %685
    %v687 = vsel %vm376, %v303, 0.0
    %688 = vadd.xlane.f32.xlu0 %v687
    %v689 = vpop.xlane.xlu0 %688
    %v690 = vsel %vm376, %v304, 0.0
    %691 = vadd.xlane.f32.xlu0 %v690
    %v692 = vpop.xlane.xlu0 %691
    %v693 = vsel %vm376, %v305, 0.0
    %694 = vadd.xlane.f32.xlu0 %v693
    %v695 = vpop.xlane.xlu0 %694
    %v696 = vsel %vm376, %v306, 0.0
    %697 = vadd.xlane.f32.xlu0 %v696
    %v698 = vpop.xlane.xlu0 %697
    %v699 = vsel %vm376, %v307, 0.0
    %700 = vadd.xlane.f32.xlu0 %v699
    %v701 = vpop.xlane.xlu0 %700
    %v702 = vsel %vm376, %v308, 0.0
    %703 = vadd.xlane.f32.xlu0 %v702
    %v704 = vpop.xlane.xlu0 %703
    %v705 = vsel %vm407, %v309, 0.0
    %706 = vadd.xlane.f32.xlu0 %v705
    %v707 = vpop.xlane.xlu0 %706
    %v708 = vsel %vm376, %v310, 0.0
    %709 = vadd.xlane.f32.xlu0 %v708
    %v710 = vpop.xlane.xlu0 %709
    %v711 = vsel %vm376, %v311, 0.0
    %712 = vadd.xlane.f32.xlu0 %v711
    %v713 = vpop.xlane.xlu0 %712
    %v714 = vsel %vm376, %v312, 0.0
    %715 = vadd.xlane.f32.xlu0 %v714
    %v716 = vpop.xlane.xlu0 %715
    %v717 = vsel %vm376, %v313, 0.0
    %718 = vadd.xlane.f32.xlu0 %v717
    %v719 = vpop.xlane.xlu0 %718
    %v720 = vsel %vm376, %v314, 0.0
    %721 = vadd.xlane.f32.xlu0 %v720
    %v722 = vpop.xlane.xlu0 %721
    %v723 = vsel %vm376, %v315, 0.0
    %724 = vadd.xlane.f32.xlu0 %v723
    %v725 = vpop.xlane.xlu0 %724
    %v726 = vsel %vm376, %v316, 0.0
    %727 = vadd.xlane.f32.xlu0 %v726
    %v728 = vpop.xlane.xlu0 %727
    %v729 = vsel %vm376, %v317, 0.0
    %730 = vadd.xlane.f32.xlu0 %v729
    %v731 = vpop.xlane.xlu0 %730
    %v732 = vsel %vm376, %v318, 0.0
    %733 = vadd.xlane.f32.xlu0 %v732
    %v734 = vpop.xlane.xlu0 %733
    %v735 = vsel %vm376, %v319, 0.0
    %736 = vadd.xlane.f32.xlu0 %v735
    %v737 = vpop.xlane.xlu0 %736
    %v738 = vsel %vm407, %v320, 0.0
    %739 = vadd.xlane.f32.xlu0 %v738
    %v740 = vpop.xlane.xlu0 %739
    %v741 = vsel %vm376, %v321, 0.0
    %742 = vadd.xlane.f32.xlu0 %v741
    %v743 = vpop.xlane.xlu0 %742
    %v744 = vsel %vm376, %v322, 0.0
    %745 = vadd.xlane.f32.xlu0 %v744
    %v746 = vpop.xlane.xlu0 %745
    %v747 = vsel %vm376, %v323, 0.0
    %748 = vadd.xlane.f32.xlu0 %v747
    %v749 = vpop.xlane.xlu0 %748
    %v750 = vsel %vm376, %v324, 0.0
    %751 = vadd.xlane.f32.xlu0 %v750
    %v752 = vpop.xlane.xlu0 %751
    %v753 = vsel %vm376, %v325, 0.0
    %754 = vadd.xlane.f32.xlu0 %v753
    %v755 = vpop.xlane.xlu0 %754
    %v756 = vsel %vm376, %v326, 0.0
    %757 = vadd.xlane.f32.xlu0 %v756
    %v758 = vpop.xlane.xlu0 %757
    %v759 = vsel %vm376, %v327, 0.0
    %760 = vadd.xlane.f32.xlu0 %v759
    %v761 = vpop.xlane.xlu0 %760
    %v762 = vsel %vm376, %v328, 0.0
    %763 = vadd.xlane.f32.xlu0 %v762
    %v764 = vpop.xlane.xlu0 %763
    %v765 = vsel %vm376, %v329, 0.0
    %766 = vadd.xlane.f32.xlu0 %v765
    %v767 = vpop.xlane.xlu0 %766
    %v768 = vsel %vm376, %v330, 0.0
    %769 = vadd.xlane.f32.xlu0 %v768
    %v770 = vpop.xlane.xlu0 %769
    %v771 = vsel %vm407, %v331, 0.0
    %772 = vadd.xlane.f32.xlu0 %v771
    %v773 = vpop.xlane.xlu0 %772
    %v774 = vsel %vm376, %v332, 0.0
    %775 = vadd.xlane.f32.xlu0 %v774
    %v776 = vpop.xlane.xlu0 %775
    %v777 = vsel %vm376, %v333, 0.0
    %778 = vadd.xlane.f32.xlu0 %v777
    %v779 = vpop.xlane.xlu0 %778
    %v780 = vsel %vm376, %v334, 0.0
    %781 = vadd.xlane.f32.xlu0 %v780
    %v782 = vpop.xlane.xlu0 %781
    %v783 = vsel %vm376, %v335, 0.0
    %784 = vadd.xlane.f32.xlu0 %v783
    %v785 = vpop.xlane.xlu0 %784
    %v786 = vsel %vm376, %v336, 0.0
    %787 = vadd.xlane.f32.xlu0 %v786
    %v788 = vpop.xlane.xlu0 %787
    %v789 = vsel %vm376, %v337, 0.0
    %790 = vadd.xlane.f32.xlu0 %v789
    %v791 = vpop.xlane.xlu0 %790
    %v792 = vsel %vm376, %v338, 0.0
    %793 = vadd.xlane.f32.xlu0 %v792
    %v794 = vpop.xlane.xlu0 %793
    %v795 = vsel %vm376, %v339, 0.0
    %796 = vadd.xlane.f32.xlu0 %v795
    %v797 = vpop.xlane.xlu0 %796
    %v798 = vsel %vm376, %v340, 0.0
    %799 = vadd.xlane.f32.xlu0 %v798
    %v800 = vpop.xlane.xlu0 %799
    %v801 = vsel %vm376, %v341, 0.0
    %802 = vadd.xlane.f32.xlu0 %v801
    %v803 = vpop.xlane.xlu0 %802
    %v804 = vsel %vm407, %v342, 0.0
    %805 = vadd.xlane.f32.xlu0 %v804
    %v806 = vpop.xlane.xlu0 %805
    %v807 = vsel %vm376, %v343, 0.0
    %808 = vadd.xlane.f32.xlu0 %v807
    %v809 = vpop.xlane.xlu0 %808
    %v810 = vsel %vm376, %v344, 0.0
    %811 = vadd.xlane.f32.xlu0 %v810
    %v812 = vpop.xlane.xlu0 %811
    %v813 = vsel %vm376, %v345, 0.0
    %814 = vadd.xlane.f32.xlu0 %v813
    %v815 = vpop.xlane.xlu0 %814
    %v816 = vsel %vm376, %v346, 0.0
    %817 = vadd.xlane.f32.xlu0 %v816
    %v818 = vpop.xlane.xlu0 %817
    %v819 = vsel %vm376, %v347, 0.0
    %820 = vadd.xlane.f32.xlu0 %v819
    %v821 = vpop.xlane.xlu0 %820
    %v822 = vsel %vm376, %v348, 0.0
    %823 = vadd.xlane.f32.xlu0 %v822
    %v824 = vpop.xlane.xlu0 %823
    %v825 = vsel %vm376, %v349, 0.0
    %826 = vadd.xlane.f32.xlu0 %v825
    %v827 = vpop.xlane.xlu0 %826
    %v828 = vsel %vm376, %v350, 0.0
    %829 = vadd.xlane.f32.xlu0 %v828
    %v830 = vpop.xlane.xlu0 %829
    %v831 = vsel %vm376, %v351, 0.0
    %832 = vadd.xlane.f32.xlu0 %v831
    %v833 = vpop.xlane.xlu0 %832
    %v834 = vsel %vm376, %v352, 0.0
    %835 = vadd.xlane.f32.xlu0 %v834
    %v836 = vpop.xlane.xlu0 %835
    %v837 = vsel %vm407, %v353, 0.0
    %838 = vadd.xlane.f32.xlu0 %v837
    %v839 = vpop.xlane.xlu0 %838
    %v840 = vsel %vm376, %v354, 0.0
    %841 = vadd.xlane.f32.xlu0 %v840
    %v842 = vpop.xlane.xlu0 %841
    %v843 = vsel %vm376, %v355, 0.0
    %844 = vadd.xlane.f32.xlu0 %v843
    %v845 = vpop.xlane.xlu0 %844
    %v846 = vsel %vm376, %v356, 0.0
    %847 = vadd.xlane.f32.xlu0 %v846
    %v848 = vpop.xlane.xlu0 %847
    %v849 = vsel %vm376, %v357, 0.0
    %850 = vadd.xlane.f32.xlu0 %v849
    %v851 = vpop.xlane.xlu0 %850
    %v852 = vsel %vm376, %v358, 0.0
    %853 = vadd.xlane.f32.xlu0 %v852
    %v854 = vpop.xlane.xlu0 %853
    %v855 = vsel %vm376, %v359, 0.0
    %856 = vadd.xlane.f32.xlu0 %v855
    %v857 = vpop.xlane.xlu0 %856
    %v858 = vsel %vm376, %v360, 0.0
    %859 = vadd.xlane.f32.xlu0 %v858
    %v860 = vpop.xlane.xlu0 %859
    %v861 = vsel %vm376, %v361, 0.0
    %862 = vadd.xlane.f32.xlu0 %v861
    %v863 = vpop.xlane.xlu0 %862
    %v864 = vsel %vm376, %v362, 0.0
    %865 = vadd.xlane.f32.xlu0 %v864
    %v866 = vpop.xlane.xlu0 %865
    %v867 = vsel %vm376, %v363, 0.0
    %868 = vadd.xlane.f32.xlu0 %v867
    %v869 = vpop.xlane.xlu0 %868
    %v870 = vsel %vm407, %v364, 0.0
    %871 = vadd.xlane.f32.xlu0 %v870
    %v872 = vpop.xlane.xlu0 %871
    %v873 = vsel %vm376, %v365, 0.0
    %874 = vadd.xlane.f32.xlu0 %v873
    %v875 = vpop.xlane.xlu0 %874
    %v876 = vsel %vm376, %v366, 0.0
    %877 = vadd.xlane.f32.xlu0 %v876
    %v878 = vpop.xlane.xlu0 %877
    %v879 = vsel %vm376, %v367, 0.0
    %880 = vadd.xlane.f32.xlu0 %v879
    %v881 = vpop.xlane.xlu0 %880
    %v882 = vsel %vm376, %v368, 0.0
    %883 = vadd.xlane.f32.xlu0 %v882
    %v884 = vpop.xlane.xlu0 %883
    %v885 = vsel %vm376, %v369, 0.0
    %886 = vadd.xlane.f32.xlu0 %v885
    %v887 = vpop.xlane.xlu0 %886
    %v888 = vsel %vm376, %v370, 0.0
    %889 = vadd.xlane.f32.xlu0 %v888
    %v890 = vpop.xlane.xlu0 %889
    %v891 = vsel %vm376, %v371, 0.0
    %892 = vadd.xlane.f32.xlu0 %v891
    %v893 = vpop.xlane.xlu0 %892
    %v894 = vsel %vm376, %v372, 0.0
    %895 = vadd.xlane.f32.xlu0 %v894
    %v896 = vpop.xlane.xlu0 %895
    %v897 = vsel %vm376, %v373, 0.0
    %898 = vadd.xlane.f32.xlu0 %v897
    %v899 = vpop.xlane.xlu0 %898
    %v900 = vsel %vm376, %v374, 0.0
    %901 = vadd.xlane.f32.xlu0 %v900
    %v902 = vpop.xlane.xlu0 %901
    %v903 = vsel %vm407, %v375, 0.0
    %904 = vadd.xlane.f32.xlu0 %v903
    %v905 = vpop.xlane.xlu0 %904
    %v906 = vstv %s193
    %v907 = vadd.f32 %v379, %v906
    %v908 = vadd.f32 %v382, %v906
    %v909 = vadd.f32 %v385, %v906
    %v910 = vadd.f32 %v388, %v906
    %v911 = vadd.f32 %v391, %v906
    %v912 = vadd.f32 %v394, %v906
    %v913 = vadd.f32 %v397, %v906
    %v914 = vadd.f32 %v400, %v906
    %v915 = vadd.f32 %v403, %v906
    %v916 = vadd.f32 %v406, %v906
    %v917 = vadd.f32 %v410, %v906
    %v918 = vadd.f32 %v413, %v906
    %v919 = vadd.f32 %v416, %v906
    %v920 = vadd.f32 %v419, %v906
    %v921 = vadd.f32 %v422, %v906
    %v922 = vadd.f32 %v425, %v906
    %v923 = vadd.f32 %v428, %v906
    %v924 = vadd.f32 %v431, %v906
    %v925 = vadd.f32 %v434, %v906
    %v926 = vadd.f32 %v437, %v906
    %v927 = vadd.f32 %v440, %v906
    %v928 = vadd.f32 %v443, %v906
    %v929 = vadd.f32 %v446, %v906
    %v930 = vadd.f32 %v449, %v906
    %v931 = vadd.f32 %v452, %v906
    %v932 = vadd.f32 %v455, %v906
    %v933 = vadd.f32 %v458, %v906
    %v934 = vadd.f32 %v461, %v906
    %v935 = vadd.f32 %v464, %v906
    %v936 = vadd.f32 %v467, %v906
    %v937 = vadd.f32 %v470, %v906
    %v938 = vadd.f32 %v473, %v906
    %v939 = vadd.f32 %v476, %v906
    %v940 = vadd.f32 %v479, %v906
    %v941 = vadd.f32 %v482, %v906
    %v942 = vadd.f32 %v485, %v906
    %v943 = vadd.f32 %v488, %v906
    %v944 = vadd.f32 %v491, %v906
    %v945 = vadd.f32 %v494, %v906
    %v946 = vadd.f32 %v497, %v906
    %v947 = vadd.f32 %v500, %v906
    %v948 = vadd.f32 %v503, %v906
    %v949 = vadd.f32 %v506, %v906
    %v950 = vadd.f32 %v509, %v906
    %v951 = vadd.f32 %v512, %v906
    %v952 = vadd.f32 %v515, %v906
    %v953 = vadd.f32 %v518, %v906
    %v954 = vadd.f32 %v521, %v906
    %v955 = vadd.f32 %v524, %v906
    %v956 = vadd.f32 %v527, %v906
    %v957 = vadd.f32 %v530, %v906
    %v958 = vadd.f32 %v533, %v906
    %v959 = vadd.f32 %v536, %v906
    %v960 = vadd.f32 %v539, %v906
    %v961 = vadd.f32 %v542, %v906
    %v962 = vadd.f32 %v545, %v906
    %v963 = vadd.f32 %v548, %v906
    %v964 = vadd.f32 %v551, %v906
    %v965 = vadd.f32 %v554, %v906
    %v966 = vadd.f32 %v557, %v906
    %v967 = vadd.f32 %v560, %v906
    %v968 = vadd.f32 %v563, %v906
    %v969 = vadd.f32 %v566, %v906
    %v970 = vadd.f32 %v569, %v906
    %v971 = vadd.f32 %v572, %v906
    %v972 = vadd.f32 %v575, %v906
    %v973 = vadd.f32 %v578, %v906
    %v974 = vadd.f32 %v581, %v906
    %v975 = vadd.f32 %v584, %v906
    %v976 = vadd.f32 %v587, %v906
    %v977 = vadd.f32 %v590, %v906
    %v978 = vadd.f32 %v593, %v906
    %v979 = vadd.f32 %v596, %v906
    %v980 = vadd.f32 %v599, %v906
    %v981 = vadd.f32 %v602, %v906
    %v982 = vadd.f32 %v605, %v906
    %v983 = vadd.f32 %v608, %v906
    %v984 = vadd.f32 %v611, %v906
    %v985 = vadd.f32 %v614, %v906
    %v986 = vadd.f32 %v617, %v906
    %v987 = vadd.f32 %v620, %v906
    %v988 = vadd.f32 %v623, %v906
    %v989 = vadd.f32 %v626, %v906
    %v990 = vadd.f32 %v629, %v906
    %v991 = vadd.f32 %v632, %v906
    %v992 = vadd.f32 %v635, %v906
    %v993 = vadd.f32 %v638, %v906
    %v994 = vadd.f32 %v641, %v906
    %v995 = vadd.f32 %v644, %v906
    %v996 = vadd.f32 %v647, %v906
    %v997 = vadd.f32 %v650, %v906
    %v998 = vadd.f32 %v653, %v906
    %v999 = vadd.f32 %v656, %v906
    %v1000 = vadd.f32 %v659, %v906
    %v1001 = vadd.f32 %v662, %v906
    %v1002 = vadd.f32 %v665, %v906
    %v1003 = vadd.f32 %v668, %v906
    %v1004 = vadd.f32 %v671, %v906
    %v1005 = vadd.f32 %v674, %v906
    %v1006 = vadd.f32 %v677, %v906
    %v1007 = vadd.f32 %v680, %v906
    %v1008 = vadd.f32 %v683, %v906
    %v1009 = vadd.f32 %v686, %v906
    %v1010 = vadd.f32 %v689, %v906
    %v1011 = vadd.f32 %v692, %v906
    %v1012 = vadd.f32 %v695, %v906
    %v1013 = vadd.f32 %v698, %v906
    %v1014 = vadd.f32 %v701, %v906
    %v1015 = vadd.f32 %v704, %v906
    %v1016 = vadd.f32 %v707, %v906
    %v1017 = vadd.f32 %v710, %v906
    %v1018 = vadd.f32 %v713, %v906
    %v1019 = vadd.f32 %v716, %v906
    %v1020 = vadd.f32 %v719, %v906
    %v1021 = vadd.f32 %v722, %v906
    %v1022 = vadd.f32 %v725, %v906
    %v1023 = vadd.f32 %v728, %v906
    %v1024 = vadd.f32 %v731, %v906
    %v1025 = vadd.f32 %v734, %v906
    %v1026 = vadd.f32 %v737, %v906
    %v1027 = vadd.f32 %v740, %v906
    %v1028 = vadd.f32 %v743, %v906
    %v1029 = vadd.f32 %v746, %v906
    %v1030 = vadd.f32 %v749, %v906
    %v1031 = vadd.f32 %v752, %v906
    %v1032 = vadd.f32 %v755, %v906
    %v1033 = vadd.f32 %v758, %v906
    %v1034 = vadd.f32 %v761, %v906
    %v1035 = vadd.f32 %v764, %v906
    %v1036 = vadd.f32 %v767, %v906
    %v1037 = vadd.f32 %v770, %v906
    %v1038 = vadd.f32 %v773, %v906
    %v1039 = vadd.f32 %v776, %v906
    %v1040 = vadd.f32 %v779, %v906
    %v1041 = vadd.f32 %v782, %v906
    %v1042 = vadd.f32 %v785, %v906
    %v1043 = vadd.f32 %v788, %v906
    %v1044 = vadd.f32 %v791, %v906
    %v1045 = vadd.f32 %v794, %v906
    %v1046 = vadd.f32 %v797, %v906
    %v1047 = vadd.f32 %v800, %v906
    %v1048 = vadd.f32 %v803, %v906
    %v1049 = vadd.f32 %v806, %v906
    %v1050 = vadd.f32 %v809, %v906
    %v1051 = vadd.f32 %v812, %v906
    %v1052 = vadd.f32 %v815, %v906
    %v1053 = vadd.f32 %v818, %v906
    %v1054 = vadd.f32 %v821, %v906
    %v1055 = vadd.f32 %v824, %v906
    %v1056 = vadd.f32 %v827, %v906
    %v1057 = vadd.f32 %v830, %v906
    %v1058 = vadd.f32 %v833, %v906
    %v1059 = vadd.f32 %v836, %v906
    %v1060 = vadd.f32 %v839, %v906
    %v1061 = vadd.f32 %v842, %v906
    %v1062 = vadd.f32 %v845, %v906
    %v1063 = vadd.f32 %v848, %v906
    %v1064 = vadd.f32 %v851, %v906
    %v1065 = vadd.f32 %v854, %v906
    %v1066 = vadd.f32 %v857, %v906
    %v1067 = vadd.f32 %v860, %v906
    %v1068 = vadd.f32 %v863, %v906
    %v1069 = vadd.f32 %v866, %v906
    %v1070 = vadd.f32 %v869, %v906
    %v1071 = vadd.f32 %v872, %v906
    %v1072 = vadd.f32 %v875, %v906
    %v1073 = vadd.f32 %v878, %v906
    %v1074 = vadd.f32 %v881, %v906
    %v1075 = vadd.f32 %v884, %v906
    %v1076 = vadd.f32 %v887, %v906
    %v1077 = vadd.f32 %v890, %v906
    %v1078 = vadd.f32 %v893, %v906
    %v1079 = vadd.f32 %v896, %v906
    %v1080 = vadd.f32 %v899, %v906
    %v1081 = vadd.f32 %v902, %v906
    %v1082 = vadd.f32 %v905, %v906
    %v1259 = vlaneseq
    %v1260 = vand.u32 %v1259, 127
    %v1261 = vlaneseq
    %v1262 = vshrl.u32 %v1261, 7
    %v1263 = vsub.s32 %v1260, %v1262
    %v1264 = vrot.slane %v907, %v1263
    %v1265 = vadd.s32 %v1260, 4294967288
    %v1266 = vlaneseq
    %v1267 = vshrl.u32 %v1266, 7
    %v1268 = vsub.s32 %v1265, %v1267
    %v1269 = vrot.slane %v908, %v1268
    %vm1270 = vcmask 130112
    %v1271 = vsel %vm1270, %v1269, %v1264
    %v1272 = vadd.s32 %v1260, 4294967280
    %v1273 = vlaneseq
    %v1274 = vshrl.u32 %v1273, 7
    %v1275 = vsub.s32 %v1272, %v1274
    %v1276 = vrot.slane %v909, %v1275
    %vm1277 = vcmask 195712
    %v1278 = vsel %vm1277, %v1276, %v1271
    %v1279 = vadd.s32 %v1260, 4294967272
    %v1280 = vlaneseq
    %v1281 = vshrl.u32 %v1280, 7
    %v1282 = vsub.s32 %v1279, %v1281
    %v1283 = vrot.slane %v910, %v1282
    %vm1284 = vcmask 261312
    %v1285 = vsel %vm1284, %v1283, %v1278
    %v1286 = vadd.s32 %v1260, 4294967264
    %v1287 = vlaneseq
    %v1288 = vshrl.u32 %v1287, 7
    %v1289 = vsub.s32 %v1286, %v1288
    %v1290 = vrot.slane %v911, %v1289
    %vm1291 = vcmask 326912
    %v1292 = vsel %vm1291, %v1290, %v1285
    %v1293 = vadd.s32 %v1260, 4294967256
    %v1294 = vlaneseq
    %v1295 = vshrl.u32 %v1294, 7
    %v1296 = vsub.s32 %v1293, %v1295
    %v1297 = vrot.slane %v912, %v1296
    %vm1298 = vcmask 392512
    %v1299 = vsel %vm1298, %v1297, %v1292
    %v1300 = vadd.s32 %v1260, 4294967248
    %v1301 = vlaneseq
    %v1302 = vshrl.u32 %v1301, 7
    %v1303 = vsub.s32 %v1300, %v1302
    %v1304 = vrot.slane %v913, %v1303
    %vm1305 = vcmask 458112
    %v1306 = vsel %vm1305, %v1304, %v1299
    %v1307 = vadd.s32 %v1260, 4294967240
    %v1308 = vlaneseq
    %v1309 = vshrl.u32 %v1308, 7
    %v1310 = vsub.s32 %v1307, %v1309
    %v1311 = vrot.slane %v914, %v1310
    %vm1312 = vcmask 523712
    %v1313 = vsel %vm1312, %v1311, %v1306
    %v1314 = vadd.s32 %v1260, 4294967232
    %v1315 = vlaneseq
    %v1316 = vshrl.u32 %v1315, 7
    %v1317 = vsub.s32 %v1314, %v1316
    %v1318 = vrot.slane %v915, %v1317
    %vm1319 = vcmask 589312
    %v1320 = vsel %vm1319, %v1318, %v1313
    %v1321 = vadd.s32 %v1260, 4294967224
    %v1322 = vlaneseq
    %v1323 = vshrl.u32 %v1322, 7
    %v1324 = vsub.s32 %v1321, %v1323
    %v1325 = vrot.slane %v916, %v1324
    %vm1326 = vcmask 654912
    %v1327 = vsel %vm1326, %v1325, %v1320
    %v1328 = vadd.s32 %v1260, 4294967216
    %v1329 = vlaneseq
    %v1330 = vshrl.u32 %v1329, 7
    %v1331 = vsub.s32 %v1328, %v1330
    %v1332 = vrot.slane %v917, %v1331
    %vm1333 = vcmask 720512
    %v1334 = vsel %vm1333, %v1332, %v1327
    %v1335 = vlaneseq
    %v1336 = vshrl.u32 %v1335, 7
    %v1337 = vsub.s32 %v1260, %v1336
    %v1338 = vrot.slane %v918, %v1337
    %v1339 = vlaneseq
    %v1340 = vshrl.u32 %v1339, 7
    %v1341 = vsub.s32 %v1265, %v1340
    %v1342 = vrot.slane %v919, %v1341
    %v1343 = vsel %vm1270, %v1342, %v1338
    %v1344 = vlaneseq
    %v1345 = vshrl.u32 %v1344, 7
    %v1346 = vsub.s32 %v1272, %v1345
    %v1347 = vrot.slane %v920, %v1346
    %v1348 = vsel %vm1277, %v1347, %v1343
    %v1349 = vlaneseq
    %v1350 = vshrl.u32 %v1349, 7
    %v1351 = vsub.s32 %v1279, %v1350
    %v1352 = vrot.slane %v921, %v1351
    %v1353 = vsel %vm1284, %v1352, %v1348
    %v1354 = vlaneseq
    %v1355 = vshrl.u32 %v1354, 7
    %v1356 = vsub.s32 %v1286, %v1355
    %v1357 = vrot.slane %v922, %v1356
    %v1358 = vsel %vm1291, %v1357, %v1353
    %v1359 = vlaneseq
    %v1360 = vshrl.u32 %v1359, 7
    %v1361 = vsub.s32 %v1293, %v1360
    %v1362 = vrot.slane %v923, %v1361
    %v1363 = vsel %vm1298, %v1362, %v1358
    %v1364 = vlaneseq
    %v1365 = vshrl.u32 %v1364, 7
    %v1366 = vsub.s32 %v1300, %v1365
    %v1367 = vrot.slane %v924, %v1366
    %v1368 = vsel %vm1305, %v1367, %v1363
    %v1369 = vlaneseq
    %v1370 = vshrl.u32 %v1369, 7
    %v1371 = vsub.s32 %v1307, %v1370
    %v1372 = vrot.slane %v925, %v1371
    %v1373 = vsel %vm1312, %v1372, %v1368
    %v1374 = vlaneseq
    %v1375 = vshrl.u32 %v1374, 7
    %v1376 = vsub.s32 %v1314, %v1375
    %v1377 = vrot.slane %v926, %v1376
    %v1378 = vsel %vm1319, %v1377, %v1373
    %v1379 = vlaneseq
    %v1380 = vshrl.u32 %v1379, 7
    %v1381 = vsub.s32 %v1321, %v1380
    %v1382 = vrot.slane %v927, %v1381
    %v1383 = vsel %vm1326, %v1382, %v1378
    %v1384 = vlaneseq
    %v1385 = vshrl.u32 %v1384, 7
    %v1386 = vsub.s32 %v1328, %v1385
    %v1387 = vrot.slane %v928, %v1386
    %v1388 = vsel %vm1333, %v1387, %v1383
    %v1389 = vlaneseq
    %v1390 = vshrl.u32 %v1389, 7
    %v1391 = vsub.s32 %v1260, %v1390
    %v1392 = vrot.slane %v929, %v1391
    %v1393 = vlaneseq
    %v1394 = vshrl.u32 %v1393, 7
    %v1395 = vsub.s32 %v1265, %v1394
    %v1396 = vrot.slane %v930, %v1395
    %v1397 = vsel %vm1270, %v1396, %v1392
    %v1398 = vlaneseq
    %v1399 = vshrl.u32 %v1398, 7
    %v1400 = vsub.s32 %v1272, %v1399
    %v1401 = vrot.slane %v931, %v1400
    %v1402 = vsel %vm1277, %v1401, %v1397
    %v1403 = vlaneseq
    %v1404 = vshrl.u32 %v1403, 7
    %v1405 = vsub.s32 %v1279, %v1404
    %v1406 = vrot.slane %v932, %v1405
    %v1407 = vsel %vm1284, %v1406, %v1402
    %v1408 = vlaneseq
    %v1409 = vshrl.u32 %v1408, 7
    %v1410 = vsub.s32 %v1286, %v1409
    %v1411 = vrot.slane %v933, %v1410
    %v1412 = vsel %vm1291, %v1411, %v1407
    %v1413 = vlaneseq
    %v1414 = vshrl.u32 %v1413, 7
    %v1415 = vsub.s32 %v1293, %v1414
    %v1416 = vrot.slane %v934, %v1415
    %v1417 = vsel %vm1298, %v1416, %v1412
    %v1418 = vlaneseq
    %v1419 = vshrl.u32 %v1418, 7
    %v1420 = vsub.s32 %v1300, %v1419
    %v1421 = vrot.slane %v935, %v1420
    %v1422 = vsel %vm1305, %v1421, %v1417
    %v1423 = vlaneseq
    %v1424 = vshrl.u32 %v1423, 7
    %v1425 = vsub.s32 %v1307, %v1424
    %v1426 = vrot.slane %v936, %v1425
    %v1427 = vsel %vm1312, %v1426, %v1422
    %v1428 = vlaneseq
    %v1429 = vshrl.u32 %v1428, 7
    %v1430 = vsub.s32 %v1314, %v1429
    %v1431 = vrot.slane %v937, %v1430
    %v1432 = vsel %vm1319, %v1431, %v1427
    %v1433 = vlaneseq
    %v1434 = vshrl.u32 %v1433, 7
    %v1435 = vsub.s32 %v1321, %v1434
    %v1436 = vrot.slane %v938, %v1435
    %v1437 = vsel %vm1326, %v1436, %v1432
    %v1438 = vlaneseq
    %v1439 = vshrl.u32 %v1438, 7
    %v1440 = vsub.s32 %v1328, %v1439
    %v1441 = vrot.slane %v939, %v1440
    %v1442 = vsel %vm1333, %v1441, %v1437
    %v1443 = vlaneseq
    %v1444 = vshrl.u32 %v1443, 7
    %v1445 = vsub.s32 %v1260, %v1444
    %v1446 = vrot.slane %v940, %v1445
    %v1447 = vlaneseq
    %v1448 = vshrl.u32 %v1447, 7
    %v1449 = vsub.s32 %v1265, %v1448
    %v1450 = vrot.slane %v941, %v1449
    %v1451 = vsel %vm1270, %v1450, %v1446
    %v1452 = vlaneseq
    %v1453 = vshrl.u32 %v1452, 7
    %v1454 = vsub.s32 %v1272, %v1453
    %v1455 = vrot.slane %v942, %v1454
    %v1456 = vsel %vm1277, %v1455, %v1451
    %v1457 = vlaneseq
    %v1458 = vshrl.u32 %v1457, 7
    %v1459 = vsub.s32 %v1279, %v1458
    %v1460 = vrot.slane %v943, %v1459
    %v1461 = vsel %vm1284, %v1460, %v1456
    %v1462 = vlaneseq
    %v1463 = vshrl.u32 %v1462, 7
    %v1464 = vsub.s32 %v1286, %v1463
    %v1465 = vrot.slane %v944, %v1464
    %v1466 = vsel %vm1291, %v1465, %v1461
    %v1467 = vlaneseq
    %v1468 = vshrl.u32 %v1467, 7
    %v1469 = vsub.s32 %v1293, %v1468
    %v1470 = vrot.slane %v945, %v1469
    %v1471 = vsel %vm1298, %v1470, %v1466
    %v1472 = vlaneseq
    %v1473 = vshrl.u32 %v1472, 7
    %v1474 = vsub.s32 %v1300, %v1473
    %v1475 = vrot.slane %v946, %v1474
    %v1476 = vsel %vm1305, %v1475, %v1471
    %v1477 = vlaneseq
    %v1478 = vshrl.u32 %v1477, 7
    %v1479 = vsub.s32 %v1307, %v1478
    %v1480 = vrot.slane %v947, %v1479
    %v1481 = vsel %vm1312, %v1480, %v1476
    %v1482 = vlaneseq
    %v1483 = vshrl.u32 %v1482, 7
    %v1484 = vsub.s32 %v1314, %v1483
    %v1485 = vrot.slane %v948, %v1484
    %v1486 = vsel %vm1319, %v1485, %v1481
    %v1487 = vlaneseq
    %v1488 = vshrl.u32 %v1487, 7
    %v1489 = vsub.s32 %v1321, %v1488
    %v1490 = vrot.slane %v949, %v1489
    %v1491 = vsel %vm1326, %v1490, %v1486
    %v1492 = vlaneseq
    %v1493 = vshrl.u32 %v1492, 7
    %v1494 = vsub.s32 %v1328, %v1493
    %v1495 = vrot.slane %v950, %v1494
    %v1496 = vsel %vm1333, %v1495, %v1491
    %v1497 = vlaneseq
    %v1498 = vshrl.u32 %v1497, 7
    %v1499 = vsub.s32 %v1260, %v1498
    %v1500 = vrot.slane %v951, %v1499
    %v1501 = vlaneseq
    %v1502 = vshrl.u32 %v1501, 7
    %v1503 = vsub.s32 %v1265, %v1502
    %v1504 = vrot.slane %v952, %v1503
    %v1505 = vsel %vm1270, %v1504, %v1500
    %v1506 = vlaneseq
    %v1507 = vshrl.u32 %v1506, 7
    %v1508 = vsub.s32 %v1272, %v1507
    %v1509 = vrot.slane %v953, %v1508
    %v1510 = vsel %vm1277, %v1509, %v1505
    %v1511 = vlaneseq
    %v1512 = vshrl.u32 %v1511, 7
    %v1513 = vsub.s32 %v1279, %v1512
    %v1514 = vrot.slane %v954, %v1513
    %v1515 = vsel %vm1284, %v1514, %v1510
    %v1516 = vlaneseq
    %v1517 = vshrl.u32 %v1516, 7
    %v1518 = vsub.s32 %v1286, %v1517
    %v1519 = vrot.slane %v955, %v1518
    %v1520 = vsel %vm1291, %v1519, %v1515
    %v1521 = vlaneseq
    %v1522 = vshrl.u32 %v1521, 7
    %v1523 = vsub.s32 %v1293, %v1522
    %v1524 = vrot.slane %v956, %v1523
    %v1525 = vsel %vm1298, %v1524, %v1520
    %v1526 = vlaneseq
    %v1527 = vshrl.u32 %v1526, 7
    %v1528 = vsub.s32 %v1300, %v1527
    %v1529 = vrot.slane %v957, %v1528
    %v1530 = vsel %vm1305, %v1529, %v1525
    %v1531 = vlaneseq
    %v1532 = vshrl.u32 %v1531, 7
    %v1533 = vsub.s32 %v1307, %v1532
    %v1534 = vrot.slane %v958, %v1533
    %v1535 = vsel %vm1312, %v1534, %v1530
    %v1536 = vlaneseq
    %v1537 = vshrl.u32 %v1536, 7
    %v1538 = vsub.s32 %v1314, %v1537
    %v1539 = vrot.slane %v959, %v1538
    %v1540 = vsel %vm1319, %v1539, %v1535
    %v1541 = vlaneseq
    %v1542 = vshrl.u32 %v1541, 7
    %v1543 = vsub.s32 %v1321, %v1542
    %v1544 = vrot.slane %v960, %v1543
    %v1545 = vsel %vm1326, %v1544, %v1540
    %v1546 = vlaneseq
    %v1547 = vshrl.u32 %v1546, 7
    %v1548 = vsub.s32 %v1328, %v1547
    %v1549 = vrot.slane %v961, %v1548
    %v1550 = vsel %vm1333, %v1549, %v1545
    %v1551 = vlaneseq
    %v1552 = vshrl.u32 %v1551, 7
    %v1553 = vsub.s32 %v1260, %v1552
    %v1554 = vrot.slane %v962, %v1553
    %v1555 = vlaneseq
    %v1556 = vshrl.u32 %v1555, 7
    %v1557 = vsub.s32 %v1265, %v1556
    %v1558 = vrot.slane %v963, %v1557
    %v1559 = vsel %vm1270, %v1558, %v1554
    %v1560 = vlaneseq
    %v1561 = vshrl.u32 %v1560, 7
    %v1562 = vsub.s32 %v1272, %v1561
    %v1563 = vrot.slane %v964, %v1562
    %v1564 = vsel %vm1277, %v1563, %v1559
    %v1565 = vlaneseq
    %v1566 = vshrl.u32 %v1565, 7
    %v1567 = vsub.s32 %v1279, %v1566
    %v1568 = vrot.slane %v965, %v1567
    %v1569 = vsel %vm1284, %v1568, %v1564
    %v1570 = vlaneseq
    %v1571 = vshrl.u32 %v1570, 7
    %v1572 = vsub.s32 %v1286, %v1571
    %v1573 = vrot.slane %v966, %v1572
    %v1574 = vsel %vm1291, %v1573, %v1569
    %v1575 = vlaneseq
    %v1576 = vshrl.u32 %v1575, 7
    %v1577 = vsub.s32 %v1293, %v1576
    %v1578 = vrot.slane %v967, %v1577
    %v1579 = vsel %vm1298, %v1578, %v1574
    %v1580 = vlaneseq
    %v1581 = vshrl.u32 %v1580, 7
    %v1582 = vsub.s32 %v1300, %v1581
    %v1583 = vrot.slane %v968, %v1582
    %v1584 = vsel %vm1305, %v1583, %v1579
    %v1585 = vlaneseq
    %v1586 = vshrl.u32 %v1585, 7
    %v1587 = vsub.s32 %v1307, %v1586
    %v1588 = vrot.slane %v969, %v1587
    %v1589 = vsel %vm1312, %v1588, %v1584
    %v1590 = vlaneseq
    %v1591 = vshrl.u32 %v1590, 7
    %v1592 = vsub.s32 %v1314, %v1591
    %v1593 = vrot.slane %v970, %v1592
    %v1594 = vsel %vm1319, %v1593, %v1589
    %v1595 = vlaneseq
    %v1596 = vshrl.u32 %v1595, 7
    %v1597 = vsub.s32 %v1321, %v1596
    %v1598 = vrot.slane %v971, %v1597
    %v1599 = vsel %vm1326, %v1598, %v1594
    %v1600 = vlaneseq
    %v1601 = vshrl.u32 %v1600, 7
    %v1602 = vsub.s32 %v1328, %v1601
    %v1603 = vrot.slane %v972, %v1602
    %v1604 = vsel %vm1333, %v1603, %v1599
    %v1605 = vlaneseq
    %v1606 = vshrl.u32 %v1605, 7
    %v1607 = vsub.s32 %v1260, %v1606
    %v1608 = vrot.slane %v973, %v1607
    %v1609 = vlaneseq
    %v1610 = vshrl.u32 %v1609, 7
    %v1611 = vsub.s32 %v1265, %v1610
    %v1612 = vrot.slane %v974, %v1611
    %v1613 = vsel %vm1270, %v1612, %v1608
    %v1614 = vlaneseq
    %v1615 = vshrl.u32 %v1614, 7
    %v1616 = vsub.s32 %v1272, %v1615
    %v1617 = vrot.slane %v975, %v1616
    %v1618 = vsel %vm1277, %v1617, %v1613
    %v1619 = vlaneseq
    %v1620 = vshrl.u32 %v1619, 7
    %v1621 = vsub.s32 %v1279, %v1620
    %v1622 = vrot.slane %v976, %v1621
    %v1623 = vsel %vm1284, %v1622, %v1618
    %v1624 = vlaneseq
    %v1625 = vshrl.u32 %v1624, 7
    %v1626 = vsub.s32 %v1286, %v1625
    %v1627 = vrot.slane %v977, %v1626
    %v1628 = vsel %vm1291, %v1627, %v1623
    %v1629 = vlaneseq
    %v1630 = vshrl.u32 %v1629, 7
    %v1631 = vsub.s32 %v1293, %v1630
    %v1632 = vrot.slane %v978, %v1631
    %v1633 = vsel %vm1298, %v1632, %v1628
    %v1634 = vlaneseq
    %v1635 = vshrl.u32 %v1634, 7
    %v1636 = vsub.s32 %v1300, %v1635
    %v1637 = vrot.slane %v979, %v1636
    %v1638 = vsel %vm1305, %v1637, %v1633
    %v1639 = vlaneseq
    %v1640 = vshrl.u32 %v1639, 7
    %v1641 = vsub.s32 %v1307, %v1640
    %v1642 = vrot.slane %v980, %v1641
    %v1643 = vsel %vm1312, %v1642, %v1638
    %v1644 = vlaneseq
    %v1645 = vshrl.u32 %v1644, 7
    %v1646 = vsub.s32 %v1314, %v1645
    %v1647 = vrot.slane %v981, %v1646
    %v1648 = vsel %vm1319, %v1647, %v1643
    %v1649 = vlaneseq
    %v1650 = vshrl.u32 %v1649, 7
    %v1651 = vsub.s32 %v1321, %v1650
    %v1652 = vrot.slane %v982, %v1651
    %v1653 = vsel %vm1326, %v1652, %v1648
    %v1654 = vlaneseq
    %v1655 = vshrl.u32 %v1654, 7
    %v1656 = vsub.s32 %v1328, %v1655
    %v1657 = vrot.slane %v983, %v1656
    %v1658 = vsel %vm1333, %v1657, %v1653
    %v1659 = vlaneseq
    %v1660 = vshrl.u32 %v1659, 7
    %v1661 = vsub.s32 %v1260, %v1660
    %v1662 = vrot.slane %v984, %v1661
    %v1663 = vlaneseq
    %v1664 = vshrl.u32 %v1663, 7
    %v1665 = vsub.s32 %v1265, %v1664
    %v1666 = vrot.slane %v985, %v1665
    %v1667 = vsel %vm1270, %v1666, %v1662
    %v1668 = vlaneseq
    %v1669 = vshrl.u32 %v1668, 7
    %v1670 = vsub.s32 %v1272, %v1669
    %v1671 = vrot.slane %v986, %v1670
    %v1672 = vsel %vm1277, %v1671, %v1667
    %v1673 = vlaneseq
    %v1674 = vshrl.u32 %v1673, 7
    %v1675 = vsub.s32 %v1279, %v1674
    %v1676 = vrot.slane %v987, %v1675
    %v1677 = vsel %vm1284, %v1676, %v1672
    %v1678 = vlaneseq
    %v1679 = vshrl.u32 %v1678, 7
    %v1680 = vsub.s32 %v1286, %v1679
    %v1681 = vrot.slane %v988, %v1680
    %v1682 = vsel %vm1291, %v1681, %v1677
    %v1683 = vlaneseq
    %v1684 = vshrl.u32 %v1683, 7
    %v1685 = vsub.s32 %v1293, %v1684
    %v1686 = vrot.slane %v989, %v1685
    %v1687 = vsel %vm1298, %v1686, %v1682
    %v1688 = vlaneseq
    %v1689 = vshrl.u32 %v1688, 7
    %v1690 = vsub.s32 %v1300, %v1689
    %v1691 = vrot.slane %v990, %v1690
    %v1692 = vsel %vm1305, %v1691, %v1687
    %v1693 = vlaneseq
    %v1694 = vshrl.u32 %v1693, 7
    %v1695 = vsub.s32 %v1307, %v1694
    %v1696 = vrot.slane %v991, %v1695
    %v1697 = vsel %vm1312, %v1696, %v1692
    %v1698 = vlaneseq
    %v1699 = vshrl.u32 %v1698, 7
    %v1700 = vsub.s32 %v1314, %v1699
    %v1701 = vrot.slane %v992, %v1700
    %v1702 = vsel %vm1319, %v1701, %v1697
    %v1703 = vlaneseq
    %v1704 = vshrl.u32 %v1703, 7
    %v1705 = vsub.s32 %v1321, %v1704
    %v1706 = vrot.slane %v993, %v1705
    %v1707 = vsel %vm1326, %v1706, %v1702
    %v1708 = vlaneseq
    %v1709 = vshrl.u32 %v1708, 7
    %v1710 = vsub.s32 %v1328, %v1709
    %v1711 = vrot.slane %v994, %v1710
    %v1712 = vsel %vm1333, %v1711, %v1707
    %v1713 = vlaneseq
    %v1714 = vshrl.u32 %v1713, 7
    %v1715 = vsub.s32 %v1260, %v1714
    %v1716 = vrot.slane %v995, %v1715
    %v1717 = vlaneseq
    %v1718 = vshrl.u32 %v1717, 7
    %v1719 = vsub.s32 %v1265, %v1718
    %v1720 = vrot.slane %v996, %v1719
    %v1721 = vsel %vm1270, %v1720, %v1716
    %v1722 = vlaneseq
    %v1723 = vshrl.u32 %v1722, 7
    %v1724 = vsub.s32 %v1272, %v1723
    %v1725 = vrot.slane %v997, %v1724
    %v1726 = vsel %vm1277, %v1725, %v1721
    %v1727 = vlaneseq
    %v1728 = vshrl.u32 %v1727, 7
    %v1729 = vsub.s32 %v1279, %v1728
    %v1730 = vrot.slane %v998, %v1729
    %v1731 = vsel %vm1284, %v1730, %v1726
    %v1732 = vlaneseq
    %v1733 = vshrl.u32 %v1732, 7
    %v1734 = vsub.s32 %v1286, %v1733
    %v1735 = vrot.slane %v999, %v1734
    %v1736 = vsel %vm1291, %v1735, %v1731
    %v1737 = vlaneseq
    %v1738 = vshrl.u32 %v1737, 7
    %v1739 = vsub.s32 %v1293, %v1738
    %v1740 = vrot.slane %v1000, %v1739
    %v1741 = vsel %vm1298, %v1740, %v1736
    %v1742 = vlaneseq
    %v1743 = vshrl.u32 %v1742, 7
    %v1744 = vsub.s32 %v1300, %v1743
    %v1745 = vrot.slane %v1001, %v1744
    %v1746 = vsel %vm1305, %v1745, %v1741
    %v1747 = vlaneseq
    %v1748 = vshrl.u32 %v1747, 7
    %v1749 = vsub.s32 %v1307, %v1748
    %v1750 = vrot.slane %v1002, %v1749
    %v1751 = vsel %vm1312, %v1750, %v1746
    %v1752 = vlaneseq
    %v1753 = vshrl.u32 %v1752, 7
    %v1754 = vsub.s32 %v1314, %v1753
    %v1755 = vrot.slane %v1003, %v1754
    %v1756 = vsel %vm1319, %v1755, %v1751
    %v1757 = vlaneseq
    %v1758 = vshrl.u32 %v1757, 7
    %v1759 = vsub.s32 %v1321, %v1758
    %v1760 = vrot.slane %v1004, %v1759
    %v1761 = vsel %vm1326, %v1760, %v1756
    %v1762 = vlaneseq
    %v1763 = vshrl.u32 %v1762, 7
    %v1764 = vsub.s32 %v1328, %v1763
    %v1765 = vrot.slane %v1005, %v1764
    %v1766 = vsel %vm1333, %v1765, %v1761
    %v1767 = vlaneseq
    %v1768 = vshrl.u32 %v1767, 7
    %v1769 = vsub.s32 %v1260, %v1768
    %v1770 = vrot.slane %v1006, %v1769
    %v1771 = vlaneseq
    %v1772 = vshrl.u32 %v1771, 7
    %v1773 = vsub.s32 %v1265, %v1772
    %v1774 = vrot.slane %v1007, %v1773
    %v1775 = vsel %vm1270, %v1774, %v1770
    %v1776 = vlaneseq
    %v1777 = vshrl.u32 %v1776, 7
    %v1778 = vsub.s32 %v1272, %v1777
    %v1779 = vrot.slane %v1008, %v1778
    %v1780 = vsel %vm1277, %v1779, %v1775
    %v1781 = vlaneseq
    %v1782 = vshrl.u32 %v1781, 7
    %v1783 = vsub.s32 %v1279, %v1782
    %v1784 = vrot.slane %v1009, %v1783
    %v1785 = vsel %vm1284, %v1784, %v1780
    %v1786 = vlaneseq
    %v1787 = vshrl.u32 %v1786, 7
    %v1788 = vsub.s32 %v1286, %v1787
    %v1789 = vrot.slane %v1010, %v1788
    %v1790 = vsel %vm1291, %v1789, %v1785
    %v1791 = vlaneseq
    %v1792 = vshrl.u32 %v1791, 7
    %v1793 = vsub.s32 %v1293, %v1792
    %v1794 = vrot.slane %v1011, %v1793
    %v1795 = vsel %vm1298, %v1794, %v1790
    %v1796 = vlaneseq
    %v1797 = vshrl.u32 %v1796, 7
    %v1798 = vsub.s32 %v1300, %v1797
    %v1799 = vrot.slane %v1012, %v1798
    %v1800 = vsel %vm1305, %v1799, %v1795
    %v1801 = vlaneseq
    %v1802 = vshrl.u32 %v1801, 7
    %v1803 = vsub.s32 %v1307, %v1802
    %v1804 = vrot.slane %v1013, %v1803
    %v1805 = vsel %vm1312, %v1804, %v1800
    %v1806 = vlaneseq
    %v1807 = vshrl.u32 %v1806, 7
    %v1808 = vsub.s32 %v1314, %v1807
    %v1809 = vrot.slane %v1014, %v1808
    %v1810 = vsel %vm1319, %v1809, %v1805
    %v1811 = vlaneseq
    %v1812 = vshrl.u32 %v1811, 7
    %v1813 = vsub.s32 %v1321, %v1812
    %v1814 = vrot.slane %v1015, %v1813
    %v1815 = vsel %vm1326, %v1814, %v1810
    %v1816 = vlaneseq
    %v1817 = vshrl.u32 %v1816, 7
    %v1818 = vsub.s32 %v1328, %v1817
    %v1819 = vrot.slane %v1016, %v1818
    %v1820 = vsel %vm1333, %v1819, %v1815
    %v1821 = vlaneseq
    %v1822 = vshrl.u32 %v1821, 7
    %v1823 = vsub.s32 %v1260, %v1822
    %v1824 = vrot.slane %v1017, %v1823
    %v1825 = vlaneseq
    %v1826 = vshrl.u32 %v1825, 7
    %v1827 = vsub.s32 %v1265, %v1826
    %v1828 = vrot.slane %v1018, %v1827
    %v1829 = vsel %vm1270, %v1828, %v1824
    %v1830 = vlaneseq
    %v1831 = vshrl.u32 %v1830, 7
    %v1832 = vsub.s32 %v1272, %v1831
    %v1833 = vrot.slane %v1019, %v1832
    %v1834 = vsel %vm1277, %v1833, %v1829
    %v1835 = vlaneseq
    %v1836 = vshrl.u32 %v1835, 7
    %v1837 = vsub.s32 %v1279, %v1836
    %v1838 = vrot.slane %v1020, %v1837
    %v1839 = vsel %vm1284, %v1838, %v1834
    %v1840 = vlaneseq
    %v1841 = vshrl.u32 %v1840, 7
    %v1842 = vsub.s32 %v1286, %v1841
    %v1843 = vrot.slane %v1021, %v1842
    %v1844 = vsel %vm1291, %v1843, %v1839
    %v1845 = vlaneseq
    %v1846 = vshrl.u32 %v1845, 7
    %v1847 = vsub.s32 %v1293, %v1846
    %v1848 = vrot.slane %v1022, %v1847
    %v1849 = vsel %vm1298, %v1848, %v1844
    %v1850 = vlaneseq
    %v1851 = vshrl.u32 %v1850, 7
    %v1852 = vsub.s32 %v1300, %v1851
    %v1853 = vrot.slane %v1023, %v1852
    %v1854 = vsel %vm1305, %v1853, %v1849
    %v1855 = vlaneseq
    %v1856 = vshrl.u32 %v1855, 7
    %v1857 = vsub.s32 %v1307, %v1856
    %v1858 = vrot.slane %v1024, %v1857
    %v1859 = vsel %vm1312, %v1858, %v1854
    %v1860 = vlaneseq
    %v1861 = vshrl.u32 %v1860, 7
    %v1862 = vsub.s32 %v1314, %v1861
    %v1863 = vrot.slane %v1025, %v1862
    %v1864 = vsel %vm1319, %v1863, %v1859
    %v1865 = vlaneseq
    %v1866 = vshrl.u32 %v1865, 7
    %v1867 = vsub.s32 %v1321, %v1866
    %v1868 = vrot.slane %v1026, %v1867
    %v1869 = vsel %vm1326, %v1868, %v1864
    %v1870 = vlaneseq
    %v1871 = vshrl.u32 %v1870, 7
    %v1872 = vsub.s32 %v1328, %v1871
    %v1873 = vrot.slane %v1027, %v1872
    %v1874 = vsel %vm1333, %v1873, %v1869
    %v1875 = vlaneseq
    %v1876 = vshrl.u32 %v1875, 7
    %v1877 = vsub.s32 %v1260, %v1876
    %v1878 = vrot.slane %v1028, %v1877
    %v1879 = vlaneseq
    %v1880 = vshrl.u32 %v1879, 7
    %v1881 = vsub.s32 %v1265, %v1880
    %v1882 = vrot.slane %v1029, %v1881
    %v1883 = vsel %vm1270, %v1882, %v1878
    %v1884 = vlaneseq
    %v1885 = vshrl.u32 %v1884, 7
    %v1886 = vsub.s32 %v1272, %v1885
    %v1887 = vrot.slane %v1030, %v1886
    %v1888 = vsel %vm1277, %v1887, %v1883
    %v1889 = vlaneseq
    %v1890 = vshrl.u32 %v1889, 7
    %v1891 = vsub.s32 %v1279, %v1890
    %v1892 = vrot.slane %v1031, %v1891
    %v1893 = vsel %vm1284, %v1892, %v1888
    %v1894 = vlaneseq
    %v1895 = vshrl.u32 %v1894, 7
    %v1896 = vsub.s32 %v1286, %v1895
    %v1897 = vrot.slane %v1032, %v1896
    %v1898 = vsel %vm1291, %v1897, %v1893
    %v1899 = vlaneseq
    %v1900 = vshrl.u32 %v1899, 7
    %v1901 = vsub.s32 %v1293, %v1900
    %v1902 = vrot.slane %v1033, %v1901
    %v1903 = vsel %vm1298, %v1902, %v1898
    %v1904 = vlaneseq
    %v1905 = vshrl.u32 %v1904, 7
    %v1906 = vsub.s32 %v1300, %v1905
    %v1907 = vrot.slane %v1034, %v1906
    %v1908 = vsel %vm1305, %v1907, %v1903
    %v1909 = vlaneseq
    %v1910 = vshrl.u32 %v1909, 7
    %v1911 = vsub.s32 %v1307, %v1910
    %v1912 = vrot.slane %v1035, %v1911
    %v1913 = vsel %vm1312, %v1912, %v1908
    %v1914 = vlaneseq
    %v1915 = vshrl.u32 %v1914, 7
    %v1916 = vsub.s32 %v1314, %v1915
    %v1917 = vrot.slane %v1036, %v1916
    %v1918 = vsel %vm1319, %v1917, %v1913
    %v1919 = vlaneseq
    %v1920 = vshrl.u32 %v1919, 7
    %v1921 = vsub.s32 %v1321, %v1920
    %v1922 = vrot.slane %v1037, %v1921
    %v1923 = vsel %vm1326, %v1922, %v1918
    %v1924 = vlaneseq
    %v1925 = vshrl.u32 %v1924, 7
    %v1926 = vsub.s32 %v1328, %v1925
    %v1927 = vrot.slane %v1038, %v1926
    %v1928 = vsel %vm1333, %v1927, %v1923
    %v1929 = vlaneseq
    %v1930 = vshrl.u32 %v1929, 7
    %v1931 = vsub.s32 %v1260, %v1930
    %v1932 = vrot.slane %v1039, %v1931
    %v1933 = vlaneseq
    %v1934 = vshrl.u32 %v1933, 7
    %v1935 = vsub.s32 %v1265, %v1934
    %v1936 = vrot.slane %v1040, %v1935
    %v1937 = vsel %vm1270, %v1936, %v1932
    %v1938 = vlaneseq
    %v1939 = vshrl.u32 %v1938, 7
    %v1940 = vsub.s32 %v1272, %v1939
    %v1941 = vrot.slane %v1041, %v1940
    %v1942 = vsel %vm1277, %v1941, %v1937
    %v1943 = vlaneseq
    %v1944 = vshrl.u32 %v1943, 7
    %v1945 = vsub.s32 %v1279, %v1944
    %v1946 = vrot.slane %v1042, %v1945
    %v1947 = vsel %vm1284, %v1946, %v1942
    %v1948 = vlaneseq
    %v1949 = vshrl.u32 %v1948, 7
    %v1950 = vsub.s32 %v1286, %v1949
    %v1951 = vrot.slane %v1043, %v1950
    %v1952 = vsel %vm1291, %v1951, %v1947
    %v1953 = vlaneseq
    %v1954 = vshrl.u32 %v1953, 7
    %v1955 = vsub.s32 %v1293, %v1954
    %v1956 = vrot.slane %v1044, %v1955
    %v1957 = vsel %vm1298, %v1956, %v1952
    %v1958 = vlaneseq
    %v1959 = vshrl.u32 %v1958, 7
    %v1960 = vsub.s32 %v1300, %v1959
    %v1961 = vrot.slane %v1045, %v1960
    %v1962 = vsel %vm1305, %v1961, %v1957
    %v1963 = vlaneseq
    %v1964 = vshrl.u32 %v1963, 7
    %v1965 = vsub.s32 %v1307, %v1964
    %v1966 = vrot.slane %v1046, %v1965
    %v1967 = vsel %vm1312, %v1966, %v1962
    %v1968 = vlaneseq
    %v1969 = vshrl.u32 %v1968, 7
    %v1970 = vsub.s32 %v1314, %v1969
    %v1971 = vrot.slane %v1047, %v1970
    %v1972 = vsel %vm1319, %v1971, %v1967
    %v1973 = vlaneseq
    %v1974 = vshrl.u32 %v1973, 7
    %v1975 = vsub.s32 %v1321, %v1974
    %v1976 = vrot.slane %v1048, %v1975
    %v1977 = vsel %vm1326, %v1976, %v1972
    %v1978 = vlaneseq
    %v1979 = vshrl.u32 %v1978, 7
    %v1980 = vsub.s32 %v1328, %v1979
    %v1981 = vrot.slane %v1049, %v1980
    %v1982 = vsel %vm1333, %v1981, %v1977
    %v1983 = vlaneseq
    %v1984 = vshrl.u32 %v1983, 7
    %v1985 = vsub.s32 %v1260, %v1984
    %v1986 = vrot.slane %v1050, %v1985
    %v1987 = vlaneseq
    %v1988 = vshrl.u32 %v1987, 7
    %v1989 = vsub.s32 %v1265, %v1988
    %v1990 = vrot.slane %v1051, %v1989
    %v1991 = vsel %vm1270, %v1990, %v1986
    %v1992 = vlaneseq
    %v1993 = vshrl.u32 %v1992, 7
    %v1994 = vsub.s32 %v1272, %v1993
    %v1995 = vrot.slane %v1052, %v1994
    %v1996 = vsel %vm1277, %v1995, %v1991
    %v1997 = vlaneseq
    %v1998 = vshrl.u32 %v1997, 7
    %v1999 = vsub.s32 %v1279, %v1998
    %v2000 = vrot.slane %v1053, %v1999
    %v2001 = vsel %vm1284, %v2000, %v1996
    %v2002 = vlaneseq
    %v2003 = vshrl.u32 %v2002, 7
    %v2004 = vsub.s32 %v1286, %v2003
    %v2005 = vrot.slane %v1054, %v2004
    %v2006 = vsel %vm1291, %v2005, %v2001
    %v2007 = vlaneseq
    %v2008 = vshrl.u32 %v2007, 7
    %v2009 = vsub.s32 %v1293, %v2008
    %v2010 = vrot.slane %v1055, %v2009
    %v2011 = vsel %vm1298, %v2010, %v2006
    %v2012 = vlaneseq
    %v2013 = vshrl.u32 %v2012, 7
    %v2014 = vsub.s32 %v1300, %v2013
    %v2015 = vrot.slane %v1056, %v2014
    %v2016 = vsel %vm1305, %v2015, %v2011
    %v2017 = vlaneseq
    %v2018 = vshrl.u32 %v2017, 7
    %v2019 = vsub.s32 %v1307, %v2018
    %v2020 = vrot.slane %v1057, %v2019
    %v2021 = vsel %vm1312, %v2020, %v2016
    %v2022 = vlaneseq
    %v2023 = vshrl.u32 %v2022, 7
    %v2024 = vsub.s32 %v1314, %v2023
    %v2025 = vrot.slane %v1058, %v2024
    %v2026 = vsel %vm1319, %v2025, %v2021
    %v2027 = vlaneseq
    %v2028 = vshrl.u32 %v2027, 7
    %v2029 = vsub.s32 %v1321, %v2028
    %v2030 = vrot.slane %v1059, %v2029
    %v2031 = vsel %vm1326, %v2030, %v2026
    %v2032 = vlaneseq
    %v2033 = vshrl.u32 %v2032, 7
    %v2034 = vsub.s32 %v1328, %v2033
    %v2035 = vrot.slane %v1060, %v2034
    %v2036 = vsel %vm1333, %v2035, %v2031
    %v2037 = vlaneseq
    %v2038 = vshrl.u32 %v2037, 7
    %v2039 = vsub.s32 %v1260, %v2038
    %v2040 = vrot.slane %v1061, %v2039
    %v2041 = vlaneseq
    %v2042 = vshrl.u32 %v2041, 7
    %v2043 = vsub.s32 %v1265, %v2042
    %v2044 = vrot.slane %v1062, %v2043
    %v2045 = vsel %vm1270, %v2044, %v2040
    %v2046 = vlaneseq
    %v2047 = vshrl.u32 %v2046, 7
    %v2048 = vsub.s32 %v1272, %v2047
    %v2049 = vrot.slane %v1063, %v2048
    %v2050 = vsel %vm1277, %v2049, %v2045
    %v2051 = vlaneseq
    %v2052 = vshrl.u32 %v2051, 7
    %v2053 = vsub.s32 %v1279, %v2052
    %v2054 = vrot.slane %v1064, %v2053
    %v2055 = vsel %vm1284, %v2054, %v2050
    %v2056 = vlaneseq
    %v2057 = vshrl.u32 %v2056, 7
    %v2058 = vsub.s32 %v1286, %v2057
    %v2059 = vrot.slane %v1065, %v2058
    %v2060 = vsel %vm1291, %v2059, %v2055
    %v2061 = vlaneseq
    %v2062 = vshrl.u32 %v2061, 7
    %v2063 = vsub.s32 %v1293, %v2062
    %v2064 = vrot.slane %v1066, %v2063
    %v2065 = vsel %vm1298, %v2064, %v2060
    %v2066 = vlaneseq
    %v2067 = vshrl.u32 %v2066, 7
    %v2068 = vsub.s32 %v1300, %v2067
    %v2069 = vrot.slane %v1067, %v2068
    %v2070 = vsel %vm1305, %v2069, %v2065
    %v2071 = vlaneseq
    %v2072 = vshrl.u32 %v2071, 7
    %v2073 = vsub.s32 %v1307, %v2072
    %v2074 = vrot.slane %v1068, %v2073
    %v2075 = vsel %vm1312, %v2074, %v2070
    %v2076 = vlaneseq
    %v2077 = vshrl.u32 %v2076, 7
    %v2078 = vsub.s32 %v1314, %v2077
    %v2079 = vrot.slane %v1069, %v2078
    %v2080 = vsel %vm1319, %v2079, %v2075
    %v2081 = vlaneseq
    %v2082 = vshrl.u32 %v2081, 7
    %v2083 = vsub.s32 %v1321, %v2082
    %v2084 = vrot.slane %v1070, %v2083
    %v2085 = vsel %vm1326, %v2084, %v2080
    %v2086 = vlaneseq
    %v2087 = vshrl.u32 %v2086, 7
    %v2088 = vsub.s32 %v1328, %v2087
    %v2089 = vrot.slane %v1071, %v2088
    %v2090 = vsel %vm1333, %v2089, %v2085
    %v2091 = vlaneseq
    %v2092 = vshrl.u32 %v2091, 7
    %v2093 = vsub.s32 %v1260, %v2092
    %v2094 = vrot.slane %v1072, %v2093
    %v2095 = vlaneseq
    %v2096 = vshrl.u32 %v2095, 7
    %v2097 = vsub.s32 %v1265, %v2096
    %v2098 = vrot.slane %v1073, %v2097
    %v2099 = vsel %vm1270, %v2098, %v2094
    %v2100 = vlaneseq
    %v2101 = vshrl.u32 %v2100, 7
    %v2102 = vsub.s32 %v1272, %v2101
    %v2103 = vrot.slane %v1074, %v2102
    %v2104 = vsel %vm1277, %v2103, %v2099
    %v2105 = vlaneseq
    %v2106 = vshrl.u32 %v2105, 7
    %v2107 = vsub.s32 %v1279, %v2106
    %v2108 = vrot.slane %v1075, %v2107
    %v2109 = vsel %vm1284, %v2108, %v2104
    %v2110 = vlaneseq
    %v2111 = vshrl.u32 %v2110, 7
    %v2112 = vsub.s32 %v1286, %v2111
    %v2113 = vrot.slane %v1076, %v2112
    %v2114 = vsel %vm1291, %v2113, %v2109
    %v2115 = vlaneseq
    %v2116 = vshrl.u32 %v2115, 7
    %v2117 = vsub.s32 %v1293, %v2116
    %v2118 = vrot.slane %v1077, %v2117
    %v2119 = vsel %vm1298, %v2118, %v2114
    %v2120 = vlaneseq
    %v2121 = vshrl.u32 %v2120, 7
    %v2122 = vsub.s32 %v1300, %v2121
    %v2123 = vrot.slane %v1078, %v2122
    %v2124 = vsel %vm1305, %v2123, %v2119
    %v2125 = vlaneseq
    %v2126 = vshrl.u32 %v2125, 7
    %v2127 = vsub.s32 %v1307, %v2126
    %v2128 = vrot.slane %v1079, %v2127
    %v2129 = vsel %vm1312, %v2128, %v2124
    %v2130 = vlaneseq
    %v2131 = vshrl.u32 %v2130, 7
    %v2132 = vsub.s32 %v1314, %v2131
    %v2133 = vrot.slane %v1080, %v2132
    %v2134 = vsel %vm1319, %v2133, %v2129
    %v2135 = vlaneseq
    %v2136 = vshrl.u32 %v2135, 7
    %v2137 = vsub.s32 %v1321, %v2136
    %v2138 = vrot.slane %v1081, %v2137
    %v2139 = vsel %vm1326, %v2138, %v2134
    %v2140 = vlaneseq
    %v2141 = vshrl.u32 %v2140, 7
    %v2142 = vsub.s32 %v1328, %v2141
    %v2143 = vrot.slane %v1082, %v2142
    %v2144 = vsel %vm1333, %v2143, %v2139
    %vm2145 = vcmask 1041409
    %v2146 = vsel %vm2145, %v1388, %v1334
    %vm2147 = vcmask 1042434
    %v2148 = vsel %vm2147, %v1442, %v2146
    %vm2149 = vcmask 1043459
    %v2150 = vsel %vm2149, %v1496, %v2148
    %vm2151 = vcmask 1044484
    %v2152 = vsel %vm2151, %v1550, %v2150
    %vm2153 = vcmask 1045509
    %v2154 = vsel %vm2153, %v1604, %v2152
    %vm2155 = vcmask 1046534
    %v2156 = vsel %vm2155, %v1658, %v2154
    %vm2157 = vcmask 1047559
    %v2158 = vsel %vm2157, %v1712, %v2156
    %v2159 = vsel %vm2145, %v1820, %v1766
    %v2160 = vsel %vm2147, %v1874, %v2159
    %v2161 = vsel %vm2149, %v1928, %v2160
    %v2162 = vsel %vm2151, %v1982, %v2161
    %v2163 = vsel %vm2153, %v2036, %v2162
    %v2164 = vsel %vm2155, %v2090, %v2163
    %v2165 = vsel %vm2157, %v2144, %v2164
    %vm2168 = vcmask 662528
    %2169 = vst.msk [vmem:[#allocation3] sm:$0xff] %vm2168, %v2158
    %2170 = vst.msk [vmem:[#allocation3 + $0x8] sm:$0xff] %vm2168, %v2165
    // Predicated region
    $region14: #{tpu_custom_call.1} parent=1 // pred_check
      _
    $region15: #{tpu_custom_call.1} parent=1 // pred_check_branch
      %2172 = sbr.rel (0) target = $region17
    $region16: #{tpu_custom_call.1} parent=1 // pred_region
      %s2174 = ssub.s32 256, 256
      %2175 = vsyncadd [#allocation4], %s2174
      %s2176 = sshll.u32 [#allocation3], 4
      %s2177 = int_to_ptr.vmem [resolvable:$true] %s2176
      %2182 = dma.vmem_to_hbm [thread:$0]  %s2177, 256, %s3, [#allocation4], 128, 128, 8
    $region17: #{tpu_custom_call.1} parent=1 // pred_fallthru
      _
    // Predicated region
    $region18: #{tpu_custom_call.1} parent=1 // pred_check
      _
    $region19: #{tpu_custom_call.1} parent=1 // pred_check_branch
      %2184 = sbr.rel (0) target = $region21
    $region20: #{tpu_custom_call.1} parent=1 // pred_region
      %2185 = dma.done [#allocation4], 256
    $region21: #{tpu_custom_call.1} parent=1 // pred_fallthru
      _
    %2186 = vsyncpa [#allocation4], 1

</llo_original>
